<compile_context>
chip_gen: v5e
topology: v5e:2x2
jax: 0.10.0
libtpu: 0.0.40
codegen_flags: <defaults>
</compile_context>

<pallas_src>
import functools

import jax
import jax.numpy as jnp
from jax import lax
from jax.experimental import pallas as pl
from jax.experimental.pallas import tpu as pltpu


# -----------------------------------------------------------------------------
# Pallas kernel
# -----------------------------------------------------------------------------
def _lstm_cell(gates, c, H):
    """PyTorch gate order i, f, g, o. Nonlinearities on the full vector first."""
    sig = jax.nn.sigmoid(gates)
    tnh = jnp.tanh(gates)
    i_g = sig[:, 0:H]
    f_g = sig[:, H:2 * H]
    g_g = tnh[:, 2 * H:3 * H]
    o_g = sig[:, 3 * H:4 * H]
    c_new = f_g * c + i_g * g_g
    h_new = o_g * jnp.tanh(c_new)
    return h_new, c_new


def fused_lstm_classifier_kernel(x_ref, wih_ref, whh_ref, bias_ref,
                                 w1_ref, b1_ref, w2_ref, b2_ref,
                                 out_ref, gx_ref, *, T, B, H):
    """x_ref: (T*2B, E) time-major embeddings for [src1 | src2] batches.
    wih/whh/bias hold [fwd | bwd] direction blocks along the last axis.
    Produces lane-padded logits (B, C_pad)."""
    B2 = 2 * B          # src1 and src2 stacked along batch
    G = 4 * H           # gate width per direction

    # (1) Input projection for all timesteps and both directions: one matmul.
    gx_ref[...] = (jnp.dot(x_ref[...], wih_ref[...],
                           preferred_element_type=jnp.float32)
                   + bias_ref[...])                                # (T*2B, 8H)

    # Hoist recurrent weights (read once, lane-aligned slices).
    whh_f = whh_ref[:, 0:G]          # (H, 4H)
    whh_b = whh_ref[:, G:2 * G]      # (H, 4H)

    # (2) Serial recurrence over time; fwd + bwd per step; fully unrolled.
    def step(t, carry):
        h_f, c_f, h_b, c_b = carry
        row_f = pl.multiple_of(t * B2, B2)
        row_b = pl.multiple_of((T - 1 - t) * B2, B2)
        gx_f = gx_ref[pl.ds(row_f, B2), pl.ds(0, G)]               # (2B, 4H)
        gx_b = gx_ref[pl.ds(row_b, B2), pl.ds(G, G)]               # (2B, 4H)
        gates_f = gx_f + jnp.dot(h_f, whh_f,
                                 preferred_element_type=jnp.float32)
        gates_b = gx_b + jnp.dot(h_b, whh_b,
                                 preferred_element_type=jnp.float32)
        h_f, c_f = _lstm_cell(gates_f, c_f, H)
        h_b, c_b = _lstm_cell(gates_b, c_b, H)
        return h_f, c_f, h_b, c_b

    zeros = jnp.zeros((B2, H), jnp.float32)
    h_f, _, h_b, _ = lax.fori_loop(0, T, step, (zeros, zeros, zeros, zeros),
                                   unroll=True)

    # (3) Fused classifier head.  enc_hidden column order is
    #     [h_fwd(src1) | h_bwd(src1) | h_fwd(src2) | h_bwd(src2)], matching
    #     torch.cat((ht1, ht2), 1) with ht = _fix_enc_hidden(h_n)[-1].
    #     Implemented as 4 row-slab matmuls of W1 (avoids an in-kernel concat).
    hf1, hf2 = h_f[0:B], h_f[B:B2]
    hb1, hb2 = h_b[0:B], h_b[B:B2]
    lin = (jnp.dot(hf1, w1_ref[0:H, :], preferred_element_type=jnp.float32)
           + jnp.dot(hb1, w1_ref[H:2 * H, :], preferred_element_type=jnp.float32)
           + jnp.dot(hf2, w1_ref[2 * H:3 * H, :], preferred_element_type=jnp.float32)
           + jnp.dot(hb2, w1_ref[3 * H:4 * H, :], preferred_element_type=jnp.float32)
           + b1_ref[...])
    lin = jnp.tanh(lin)                       # dropout(0.1) == identity (eval)
    logits = (jnp.dot(lin, w2_ref[...], preferred_element_type=jnp.float32)
              + b2_ref[...])                  # (B, C_pad), lane-dense store
    out_ref[...] = logits.astype(out_ref.dtype)


# -----------------------------------------------------------------------------
# Wrapper
# -----------------------------------------------------------------------------
def fused_forward_call(x2d, wih, whh, bias, w1, b1, w2p, b2p, *, T, B, H):
    B2 = 2 * B
    C_pad = w2p.shape[1]
    kernel = functools.partial(fused_lstm_classifier_kernel, T=T, B=B, H=H)
    return pl.pallas_call(
        kernel,
        out_shape=jax.ShapeDtypeStruct((B, C_pad), jnp.float32),
        in_specs=[
            pl.BlockSpec(x2d.shape, lambda: (0, 0)),
            pl.BlockSpec(wih.shape, lambda: (0, 0)),
            pl.BlockSpec(whh.shape, lambda: (0, 0)),
            pl.BlockSpec(bias.shape, lambda: (0, 0)),
            pl.BlockSpec(w1.shape, lambda: (0, 0)),
            pl.BlockSpec(b1.shape, lambda: (0, 0)),
            pl.BlockSpec(w2p.shape, lambda: (0, 0)),
            pl.BlockSpec(b2p.shape, lambda: (0, 0)),
        ],
        out_specs=pl.BlockSpec((B, C_pad), lambda: (0, 0)),
        scratch_shapes=[pltpu.VMEM((T * B2, 8 * H), jnp.float32)],
    )(x2d, wih, whh, bias, w1, b1, w2p, b2p)


def _pad_lanes(a, target):
    pad = target - a.shape[-1]
    return a if pad == 0 else jnp.pad(a, ((0, 0), (0, pad)))


@jax.jit
def lstm_classifier_forward(src1, src2, params):
    """src1, src2: (T, B) int32 token ids (time-major). Returns (B, num_classes)."""
    T, B = src1.shape
    H = params["whh"].shape[0]
    C = params["w2"].shape[1]
    C_pad = max(128, ((C + 127) // 128) * 128)

    tokens = jnp.concatenate([src1, src2], axis=1)           # (T, 2B)
    emb = jnp.take(params["emb"], tokens, axis=0)            # (T, 2B, E)
    x2d = emb.reshape(T * 2 * B, emb.shape[-1])              # (T*2B, E)

    w2p = _pad_lanes(params["w2"], C_pad)                    # (rnn, C_pad)
    b2p = _pad_lanes(params["b2"], C_pad)                    # (1, C_pad)

    out = fused_forward_call(x2d, params["wih"], params["whh"], params["bias"],
                             params["w1"], params["b1"], w2p, b2p,
                             T=T, B=B, H=H)
    return out[:, :C]


# -----------------------------------------------------------------------------
# Parameters
# -----------------------------------------------------------------------------
def init_params(key, vocab, word_vec_size, rnn_size, num_classes):
    """Bidirectional single-layer LSTM encoder + linear + classifier head."""
    H = rnn_size // 2           # per-direction hidden size (brnn=True)
    E = word_vec_size
    keys = jax.random.split(key, 16)
    ki = iter(keys)
    s = 1.0 / jnp.sqrt(jnp.float32(H))

    def u(k, shape):
        return jax.random.uniform(k, shape, jnp.float32, -s, s)

    # Embedding, padding_idx = 0 (onmt.Constants.PAD)
    emb = jax.random.normal(next(ki), (vocab, E), jnp.float32) * 0.1
    emb = emb.at[0].set(0.0)

    def lstm_dir():
        w_ih = u(next(ki), (E, 4 * H))          # stored pre-transposed: x @ W
        w_hh = u(next(ki), (H, 4 * H))
        b = (u(next(ki), (4 * H,)) + u(next(ki), (4 * H,))).reshape(1, 4 * H)
        return w_ih, w_hh, b

    wih_f, whh_f, b_f = lstm_dir()
    wih_b, whh_b, b_b = lstm_dir()
    wih = jnp.concatenate([wih_f, wih_b], axis=1)    # (E, 8H) = [fwd | bwd]
    whh = jnp.concatenate([whh_f, whh_b], axis=1)    # (H, 8H)
    bias = jnp.concatenate([b_f, b_b], axis=1)       # (1, 8H)

    s1 = 1.0 / jnp.sqrt(jnp.float32(2 * rnn_size))
    w1 = jax.random.uniform(next(ki), (2 * rnn_size, rnn_size), jnp.float32, -s1, s1)
    b1 = jax.random.uniform(next(ki), (1, rnn_size), jnp.float32, -s1, s1)
    s2 = 1.0 / jnp.sqrt(jnp.float32(rnn_size))
    w2 = jax.random.uniform(next(ki), (rnn_size, num_classes), jnp.float32, -s2, s2)
    b2 = jax.random.uniform(next(ki), (1, num_classes), jnp.float32, -s2, s2)

    return dict(emb=emb, wih=wih, whh=whh, bias=bias, w1=w1, b1=b1, w2=w2, b2=b2)


# -----------------------------------------------------------------------------
# Pure-JAX reference (for a correctness check against the fused kernel)
# -----------------------------------------------------------------------------
def _reference_forward(src1, src2, params):
    H = params["whh"].shape[0]
    G = 4 * H

    def run_dir(x_seq, wih, whh, b):
        def cell(carry, x_t):
            h, c = carry
            g = x_t @ wih + h @ whh + b[0]
            i = jax.nn.sigmoid(g[:, 0:H]); f = jax.nn.sigmoid(g[:, H:2 * H])
            gg = jnp.tanh(g[:, 2 * H:3 * H]); o = jax.nn.sigmoid(g[:, 3 * H:4 * H])
            c = f * c + i * gg
            h = o * jnp.tanh(c)
            return (h, c), None
        Bb = x_seq.shape[1]
        init = (jnp.zeros((Bb, H), jnp.float32), jnp.zeros((Bb, H), jnp.float32))
        (h, _), _ = lax.scan(cell, init, x_seq)
        return h

    def enc(tokens):
        x = jnp.take(params["emb"], tokens, axis=0)
        h_f = run_dir(x, params["wih"][:, :G], params["whh"][:, :G],
                      params["bias"][:, :G])
        h_b = run_dir(x[::-1], params["wih"][:, G:], params["whh"][:, G:],
                      params["bias"][:, G:])
        return jnp.concatenate([h_f, h_b], axis=1)

    ht1, ht2 = enc(src1), enc(src2)
    enc_hidden = jnp.concatenate([ht1, ht2], axis=1)
    lin = jnp.tanh(enc_hidden @ params["w1"] + params["b1"])
    return lin @ params["w2"] + params["b2"]


# -----------------------------------------------------------------------------
# Main
# -----------------------------------------------------------------------------
if __name__ == "__main__":
    T, B = 8, 8                # seq_len, batch
    vocab = 50
    word_vec_size = 32
    rnn_size = 64              # opt.rnn_size; hidden per direction = 32 (brnn)
    num_classes = 8

    key = jax.random.PRNGKey(0)
    kp, k1, k2 = jax.random.split(key, 3)
    params = init_params(kp, vocab, word_vec_size, rnn_size, num_classes)

    # token ids in [1, vocab) to avoid the padding row (0) dominating
    src1 = jax.random.randint(k1, (T, B), 1, vocab, dtype=jnp.int32)
    src2 = jax.random.randint(k2, (T, B), 1, vocab, dtype=jnp.int32)

    logits = lstm_classifier_forward(src1, src2, params)
    jax.block_until_ready(logits)
    assert logits.shape == (B, num_classes), logits.shape

    ref = _reference_forward(src1, src2, params)
    assert bool(jnp.allclose(logits, ref, atol=2e-3, rtol=2e-3)), (
        "mismatch vs pure-JAX reference")

    print("KERNEL_OK")
</pallas_src>

<mosaic_0001>
module attributes {stable_mosaic.version = 11 : i64} {
  func.func @fused_lstm_classifier_kernel(%arg0: memref<128x32xf32, #tpu.memory_space<vmem>>, %arg1: memref<32x256xf32, #tpu.memory_space<vmem>>, %arg2: memref<32x256xf32, #tpu.memory_space<vmem>>, %arg3: memref<1x256xf32, #tpu.memory_space<vmem>>, %arg4: memref<128x64xf32, #tpu.memory_space<vmem>>, %arg5: memref<1x64xf32, #tpu.memory_space<vmem>>, %arg6: memref<64x128xf32, #tpu.memory_space<vmem>>, %arg7: memref<1x128xf32, #tpu.memory_space<vmem>>, %arg8: memref<8x128xf32, #tpu.memory_space<vmem>>, %arg9: memref<128x256xf32, #tpu.memory_space<vmem>>) attributes {dimension_semantics = [], scalar_prefetch = 0 : i64, scratch_operands = 1 : i64, tpu.core_type = #tpu.core_type<tc>} {
    %c0 = arith.constant 0 : index
    %c0_0 = arith.constant 0 : index
    %0 = vector.load %arg0[%c0, %c0_0] : memref<128x32xf32, #tpu.memory_space<vmem>>, vector<128x32xf32>
    %c0_1 = arith.constant 0 : index
    %c0_2 = arith.constant 0 : index
    %1 = vector.load %arg1[%c0_1, %c0_2] : memref<32x256xf32, #tpu.memory_space<vmem>>, vector<32x256xf32>
    %cst = arith.constant dense<0.000000e+00> : vector<128x256xf32>
    %2 = tpu.matmul %0, %1, %cst {dimension_numbers = #tpu.dot_dimension_numbers<[1], [0], [0], [1], [0, 0, 1, 1], [], []>} : vector<128x32xf32>, vector<32x256xf32>, vector<128x256xf32> -> vector<128x256xf32>
    %c0_3 = arith.constant 0 : index
    %c0_4 = arith.constant 0 : index
    %3 = vector.load %arg3[%c0_3, %c0_4] : memref<1x256xf32, #tpu.memory_space<vmem>>, vector<1x256xf32>
    %4 = vector.broadcast %3 : vector<1x256xf32> to vector<128x256xf32>
    %5 = arith.addf %2, %4 : vector<128x256xf32>
    %c0_5 = arith.constant 0 : index
    %c0_6 = arith.constant 0 : index
    %6 = vector.load %arg9[%c0_5, %c0_6] : memref<128x256xf32, #tpu.memory_space<vmem>>, vector<128x256xf32>
    tpu.vector_store %arg9[%c0_5, %c0_6], %5 {strides = array<i32>} : memref<128x256xf32, #tpu.memory_space<vmem>>, vector<128x256xf32>,
    %c0_7 = arith.constant 0 : index
    %c0_8 = arith.constant 0 : index
    %7 = vector.load %arg2[%c0_7, %c0_8] : memref<32x256xf32, #tpu.memory_space<vmem>>, vector<32x128xf32>
    %c0_9 = arith.constant 0 : index
    %c128 = arith.constant 128 : index
    %8 = vector.load %arg2[%c0_9, %c128] : memref<32x256xf32, #tpu.memory_space<vmem>>, vector<32x128xf32>
    %cst_10 = arith.constant 0.000000e+00 : f32
    %9 = vector.broadcast %cst_10 : f32 to vector<16x32xf32>
    %c0_i32 = arith.constant 0 : i32
    %c16_i32 = arith.constant 16 : i32
    %10 = arith.muli %c0_i32, %c16_i32 : i32
    %11 = tpu.assume_multiple %10, 16 : i32
    %c7_i32 = arith.constant 7 : i32
    %12 = arith.subi %c7_i32, %c0_i32 : i32
    %c16_i32_11 = arith.constant 16 : i32
    %13 = arith.muli %12, %c16_i32_11 : i32
    %14 = tpu.assume_multiple %13, 16 : i32
    %15 = arith.index_cast %11 : i32 to index
    %c0_12 = arith.constant 0 : index
    %16 = vector.load %arg9[%15, %c0_12] : memref<128x256xf32, #tpu.memory_space<vmem>>, vector<16x128xf32>
    %17 = arith.index_cast %14 : i32 to index
    %c128_13 = arith.constant 128 : index
    %18 = vector.load %arg9[%17, %c128_13] : memref<128x256xf32, #tpu.memory_space<vmem>>, vector<16x128xf32>
    %cst_14 = arith.constant dense<0.000000e+00> : vector<16x128xf32>
    %19 = tpu.matmul %9, %7, %cst_14 {dimension_numbers = #tpu.dot_dimension_numbers<[1], [0], [0], [1], [0, 0, 1, 1], [], []>} : vector<16x32xf32>, vector<32x128xf32>, vector<16x128xf32> -> vector<16x128xf32>
    %20 = arith.addf %16, %19 : vector<16x128xf32>
    %cst_15 = arith.constant dense<0.000000e+00> : vector<16x128xf32>
    %21 = tpu.matmul %9, %8, %cst_15 {dimension_numbers = #tpu.dot_dimension_numbers<[1], [0], [0], [1], [0, 0, 1, 1], [], []>} : vector<16x32xf32>, vector<32x128xf32>, vector<16x128xf32> -> vector<16x128xf32>
    %22 = arith.addf %18, %21 : vector<16x128xf32>
    %23 = arith.negf %20 : vector<16x128xf32>
    %24 = math.exp %23 : vector<16x128xf32>
    %cst_16 = arith.constant 1.000000e+00 : f32
    %25 = vector.broadcast %cst_16 : f32 to vector<16x128xf32>
    %26 = arith.addf %25, %24 : vector<16x128xf32>
    %27 = arith.divf %25, %26 : vector<16x128xf32>
    %28 = math.tanh %20 : vector<16x128xf32>
    %29 = vector.extract_strided_slice %27 {offsets = [0, 0], sizes = [16, 32], strides = [1, 1]} : vector<16x128xf32> to vector<16x32xf32>
    %30 = vector.extract_strided_slice %27 {offsets = [0, 32], sizes = [16, 32], strides = [1, 1]} : vector<16x128xf32> to vector<16x32xf32>
    %31 = vector.extract_strided_slice %28 {offsets = [0, 64], sizes = [16, 32], strides = [1, 1]} : vector<16x128xf32> to vector<16x32xf32>
    %32 = vector.extract_strided_slice %27 {offsets = [0, 96], sizes = [16, 32], strides = [1, 1]} : vector<16x128xf32> to vector<16x32xf32>
    %33 = arith.mulf %30, %9 : vector<16x32xf32>
    %34 = arith.mulf %29, %31 : vector<16x32xf32>
    %35 = arith.addf %33, %34 : vector<16x32xf32>
    %36 = math.tanh %35 : vector<16x32xf32>
    %37 = arith.mulf %32, %36 : vector<16x32xf32>
    %38 = arith.negf %22 : vector<16x128xf32>
    %39 = math.exp %38 : vector<16x128xf32>
    %cst_17 = arith.constant 1.000000e+00 : f32
    %40 = vector.broadcast %cst_17 : f32 to vector<16x128xf32>
    %41 = arith.addf %40, %39 : vector<16x128xf32>
    %42 = arith.divf %40, %41 : vector<16x128xf32>
    %43 = math.tanh %22 : vector<16x128xf32>
    %44 = vector.extract_strided_slice %42 {offsets = [0, 0], sizes = [16, 32], strides = [1, 1]} : vector<16x128xf32> to vector<16x32xf32>
    %45 = vector.extract_strided_slice %42 {offsets = [0, 32], sizes = [16, 32], strides = [1, 1]} : vector<16x128xf32> to vector<16x32xf32>
    %46 = vector.extract_strided_slice %43 {offsets = [0, 64], sizes = [16, 32], strides = [1, 1]} : vector<16x128xf32> to vector<16x32xf32>
    %47 = vector.extract_strided_slice %42 {offsets = [0, 96], sizes = [16, 32], strides = [1, 1]} : vector<16x128xf32> to vector<16x32xf32>
    %48 = arith.mulf %45, %9 : vector<16x32xf32>
    %49 = arith.mulf %44, %46 : vector<16x32xf32>
    %50 = arith.addf %48, %49 : vector<16x32xf32>
    %51 = math.tanh %50 : vector<16x32xf32>
    %52 = arith.mulf %47, %51 : vector<16x32xf32>
    %c1_i32 = arith.constant 1 : i32
    %c16_i32_18 = arith.constant 16 : i32
    %53 = arith.muli %c1_i32, %c16_i32_18 : i32
    %54 = tpu.assume_multiple %53, 16 : i32
    %c7_i32_19 = arith.constant 7 : i32
    %55 = arith.subi %c7_i32_19, %c1_i32 : i32
    %c16_i32_20 = arith.constant 16 : i32
    %56 = arith.muli %55, %c16_i32_20 : i32
    %57 = tpu.assume_multiple %56, 16 : i32
    %58 = arith.index_cast %54 : i32 to index
    %c0_21 = arith.constant 0 : index
    %59 = vector.load %arg9[%58, %c0_21] : memref<128x256xf32, #tpu.memory_space<vmem>>, vector<16x128xf32>
    %60 = arith.index_cast %57 : i32 to index
    %c128_22 = arith.constant 128 : index
    %61 = vector.load %arg9[%60, %c128_22] : memref<128x256xf32, #tpu.memory_space<vmem>>, vector<16x128xf32>
    %cst_23 = arith.constant dense<0.000000e+00> : vector<16x128xf32>
    %62 = tpu.matmul %37, %7, %cst_23 {dimension_numbers = #tpu.dot_dimension_numbers<[1], [0], [0], [1], [0, 0, 1, 1], [], []>} : vector<16x32xf32>, vector<32x128xf32>, vector<16x128xf32> -> vector<16x128xf32>
    %63 = arith.addf %59, %62 : vector<16x128xf32>
    %cst_24 = arith.constant dense<0.000000e+00> : vector<16x128xf32>
    %64 = tpu.matmul %52, %8, %cst_24 {dimension_numbers = #tpu.dot_dimension_numbers<[1], [0], [0], [1], [0, 0, 1, 1], [], []>} : vector<16x32xf32>, vector<32x128xf32>, vector<16x128xf32> -> vector<16x128xf32>
    %65 = arith.addf %61, %64 : vector<16x128xf32>
    %66 = arith.negf %63 : vector<16x128xf32>
    %67 = math.exp %66 : vector<16x128xf32>
    %cst_25 = arith.constant 1.000000e+00 : f32
    %68 = vector.broadcast %cst_25 : f32 to vector<16x128xf32>
    %69 = arith.addf %68, %67 : vector<16x128xf32>
    %70 = arith.divf %68, %69 : vector<16x128xf32>
    %71 = math.tanh %63 : vector<16x128xf32>
    %72 = vector.extract_strided_slice %70 {offsets = [0, 0], sizes = [16, 32], strides = [1, 1]} : vector<16x128xf32> to vector<16x32xf32>
    %73 = vector.extract_strided_slice %70 {offsets = [0, 32], sizes = [16, 32], strides = [1, 1]} : vector<16x128xf32> to vector<16x32xf32>
    %74 = vector.extract_strided_slice %71 {offsets = [0, 64], sizes = [16, 32], strides = [1, 1]} : vector<16x128xf32> to vector<16x32xf32>
    %75 = vector.extract_strided_slice %70 {offsets = [0, 96], sizes = [16, 32], strides = [1, 1]} : vector<16x128xf32> to vector<16x32xf32>
    %76 = arith.mulf %73, %35 : vector<16x32xf32>
    %77 = arith.mulf %72, %74 : vector<16x32xf32>
    %78 = arith.addf %76, %77 : vector<16x32xf32>
    %79 = math.tanh %78 : vector<16x32xf32>
    %80 = arith.mulf %75, %79 : vector<16x32xf32>
    %81 = arith.negf %65 : vector<16x128xf32>
    %82 = math.exp %81 : vector<16x128xf32>
    %cst_26 = arith.constant 1.000000e+00 : f32
    %83 = vector.broadcast %cst_26 : f32 to vector<16x128xf32>
    %84 = arith.addf %83, %82 : vector<16x128xf32>
    %85 = arith.divf %83, %84 : vector<16x128xf32>
    %86 = math.tanh %65 : vector<16x128xf32>
    %87 = vector.extract_strided_slice %85 {offsets = [0, 0], sizes = [16, 32], strides = [1, 1]} : vector<16x128xf32> to vector<16x32xf32>
    %88 = vector.extract_strided_slice %85 {offsets = [0, 32], sizes = [16, 32], strides = [1, 1]} : vector<16x128xf32> to vector<16x32xf32>
    %89 = vector.extract_strided_slice %86 {offsets = [0, 64], sizes = [16, 32], strides = [1, 1]} : vector<16x128xf32> to vector<16x32xf32>
    %90 = vector.extract_strided_slice %85 {offsets = [0, 96], sizes = [16, 32], strides = [1, 1]} : vector<16x128xf32> to vector<16x32xf32>
    %91 = arith.mulf %88, %50 : vector<16x32xf32>
    %92 = arith.mulf %87, %89 : vector<16x32xf32>
    %93 = arith.addf %91, %92 : vector<16x32xf32>
    %94 = math.tanh %93 : vector<16x32xf32>
    %95 = arith.mulf %90, %94 : vector<16x32xf32>
    %c2_i32 = arith.constant 2 : i32
    %c16_i32_27 = arith.constant 16 : i32
    %96 = arith.muli %c2_i32, %c16_i32_27 : i32
    %97 = tpu.assume_multiple %96, 16 : i32
    %c7_i32_28 = arith.constant 7 : i32
    %98 = arith.subi %c7_i32_28, %c2_i32 : i32
    %c16_i32_29 = arith.constant 16 : i32
    %99 = arith.muli %98, %c16_i32_29 : i32
    %100 = tpu.assume_multiple %99, 16 : i32
    %101 = arith.index_cast %97 : i32 to index
    %c0_30 = arith.constant 0 : index
    %102 = vector.load %arg9[%101, %c0_30] : memref<128x256xf32, #tpu.memory_space<vmem>>, vector<16x128xf32>
    %103 = arith.index_cast %100 : i32 to index
    %c128_31 = arith.constant 128 : index
    %104 = vector.load %arg9[%103, %c128_31] : memref<128x256xf32, #tpu.memory_space<vmem>>, vector<16x128xf32>
    %cst_32 = arith.constant dense<0.000000e+00> : vector<16x128xf32>
    %105 = tpu.matmul %80, %7, %cst_32 {dimension_numbers = #tpu.dot_dimension_numbers<[1], [0], [0], [1], [0, 0, 1, 1], [], []>} : vector<16x32xf32>, vector<32x128xf32>, vector<16x128xf32> -> vector<16x128xf32>
    %106 = arith.addf %102, %105 : vector<16x128xf32>
    %cst_33 = arith.constant dense<0.000000e+00> : vector<16x128xf32>
    %107 = tpu.matmul %95, %8, %cst_33 {dimension_numbers = #tpu.dot_dimension_numbers<[1], [0], [0], [1], [0, 0, 1, 1], [], []>} : vector<16x32xf32>, vector<32x128xf32>, vector<16x128xf32> -> vector<16x128xf32>
    %108 = arith.addf %104, %107 : vector<16x128xf32>
    %109 = arith.negf %106 : vector<16x128xf32>
    %110 = math.exp %109 : vector<16x128xf32>
    %cst_34 = arith.constant 1.000000e+00 : f32
    %111 = vector.broadcast %cst_34 : f32 to vector<16x128xf32>
    %112 = arith.addf %111, %110 : vector<16x128xf32>
    %113 = arith.divf %111, %112 : vector<16x128xf32>
    %114 = math.tanh %106 : vector<16x128xf32>
    %115 = vector.extract_strided_slice %113 {offsets = [0, 0], sizes = [16, 32], strides = [1, 1]} : vector<16x128xf32> to vector<16x32xf32>
    %116 = vector.extract_strided_slice %113 {offsets = [0, 32], sizes = [16, 32], strides = [1, 1]} : vector<16x128xf32> to vector<16x32xf32>
    %117 = vector.extract_strided_slice %114 {offsets = [0, 64], sizes = [16, 32], strides = [1, 1]} : vector<16x128xf32> to vector<16x32xf32>
    %118 = vector.extract_strided_slice %113 {offsets = [0, 96], sizes = [16, 32], strides = [1, 1]} : vector<16x128xf32> to vector<16x32xf32>
    %119 = arith.mulf %116, %78 : vector<16x32xf32>
    %120 = arith.mulf %115, %117 : vector<16x32xf32>
    %121 = arith.addf %119, %120 : vector<16x32xf32>
    %122 = math.tanh %121 : vector<16x32xf32>
    %123 = arith.mulf %118, %122 : vector<16x32xf32>
    %124 = arith.negf %108 : vector<16x128xf32>
    %125 = math.exp %124 : vector<16x128xf32>
    %cst_35 = arith.constant 1.000000e+00 : f32
    %126 = vector.broadcast %cst_35 : f32 to vector<16x128xf32>
    %127 = arith.addf %126, %125 : vector<16x128xf32>
    %128 = arith.divf %126, %127 : vector<16x128xf32>
    %129 = math.tanh %108 : vector<16x128xf32>
    %130 = vector.extract_strided_slice %128 {offsets = [0, 0], sizes = [16, 32], strides = [1, 1]} : vector<16x128xf32> to vector<16x32xf32>
    %131 = vector.extract_strided_slice %128 {offsets = [0, 32], sizes = [16, 32], strides = [1, 1]} : vector<16x128xf32> to vector<16x32xf32>
    %132 = vector.extract_strided_slice %129 {offsets = [0, 64], sizes = [16, 32], strides = [1, 1]} : vector<16x128xf32> to vector<16x32xf32>
    %133 = vector.extract_strided_slice %128 {offsets = [0, 96], sizes = [16, 32], strides = [1, 1]} : vector<16x128xf32> to vector<16x32xf32>
    %134 = arith.mulf %131, %93 : vector<16x32xf32>
    %135 = arith.mulf %130, %132 : vector<16x32xf32>
    %136 = arith.addf %134, %135 : vector<16x32xf32>
    %137 = math.tanh %136 : vector<16x32xf32>
    %138 = arith.mulf %133, %137 : vector<16x32xf32>
    %c3_i32 = arith.constant 3 : i32
    %c16_i32_36 = arith.constant 16 : i32
    %139 = arith.muli %c3_i32, %c16_i32_36 : i32
    %140 = tpu.assume_multiple %139, 16 : i32
    %c7_i32_37 = arith.constant 7 : i32
    %141 = arith.subi %c7_i32_37, %c3_i32 : i32
    %c16_i32_38 = arith.constant 16 : i32
    %142 = arith.muli %141, %c16_i32_38 : i32
    %143 = tpu.assume_multiple %142, 16 : i32
    %144 = arith.index_cast %140 : i32 to index
    %c0_39 = arith.constant 0 : index
    %145 = vector.load %arg9[%144, %c0_39] : memref<128x256xf32, #tpu.memory_space<vmem>>, vector<16x128xf32>
    %146 = arith.index_cast %143 : i32 to index
    %c128_40 = arith.constant 128 : index
    %147 = vector.load %arg9[%146, %c128_40] : memref<128x256xf32, #tpu.memory_space<vmem>>, vector<16x128xf32>
    %cst_41 = arith.constant dense<0.000000e+00> : vector<16x128xf32>
    %148 = tpu.matmul %123, %7, %cst_41 {dimension_numbers = #tpu.dot_dimension_numbers<[1], [0], [0], [1], [0, 0, 1, 1], [], []>} : vector<16x32xf32>, vector<32x128xf32>, vector<16x128xf32> -> vector<16x128xf32>
    %149 = arith.addf %145, %148 : vector<16x128xf32>
    %cst_42 = arith.constant dense<0.000000e+00> : vector<16x128xf32>
    %150 = tpu.matmul %138, %8, %cst_42 {dimension_numbers = #tpu.dot_dimension_numbers<[1], [0], [0], [1], [0, 0, 1, 1], [], []>} : vector<16x32xf32>, vector<32x128xf32>, vector<16x128xf32> -> vector<16x128xf32>
    %151 = arith.addf %147, %150 : vector<16x128xf32>
    %152 = arith.negf %149 : vector<16x128xf32>
    %153 = math.exp %152 : vector<16x128xf32>
    %cst_43 = arith.constant 1.000000e+00 : f32
    %154 = vector.broadcast %cst_43 : f32 to vector<16x128xf32>
    %155 = arith.addf %154, %153 : vector<16x128xf32>
    %156 = arith.divf %154, %155 : vector<16x128xf32>
    %157 = math.tanh %149 : vector<16x128xf32>
    %158 = vector.extract_strided_slice %156 {offsets = [0, 0], sizes = [16, 32], strides = [1, 1]} : vector<16x128xf32> to vector<16x32xf32>
    %159 = vector.extract_strided_slice %156 {offsets = [0, 32], sizes = [16, 32], strides = [1, 1]} : vector<16x128xf32> to vector<16x32xf32>
    %160 = vector.extract_strided_slice %157 {offsets = [0, 64], sizes = [16, 32], strides = [1, 1]} : vector<16x128xf32> to vector<16x32xf32>
    %161 = vector.extract_strided_slice %156 {offsets = [0, 96], sizes = [16, 32], strides = [1, 1]} : vector<16x128xf32> to vector<16x32xf32>
    %162 = arith.mulf %159, %121 : vector<16x32xf32>
    %163 = arith.mulf %158, %160 : vector<16x32xf32>
    %164 = arith.addf %162, %163 : vector<16x32xf32>
    %165 = math.tanh %164 : vector<16x32xf32>
    %166 = arith.mulf %161, %165 : vector<16x32xf32>
    %167 = arith.negf %151 : vector<16x128xf32>
    %168 = math.exp %167 : vector<16x128xf32>
    %cst_44 = arith.constant 1.000000e+00 : f32
    %169 = vector.broadcast %cst_44 : f32 to vector<16x128xf32>
    %170 = arith.addf %169, %168 : vector<16x128xf32>
    %171 = arith.divf %169, %170 : vector<16x128xf32>
    %172 = math.tanh %151 : vector<16x128xf32>
    %173 = vector.extract_strided_slice %171 {offsets = [0, 0], sizes = [16, 32], strides = [1, 1]} : vector<16x128xf32> to vector<16x32xf32>
    %174 = vector.extract_strided_slice %171 {offsets = [0, 32], sizes = [16, 32], strides = [1, 1]} : vector<16x128xf32> to vector<16x32xf32>
    %175 = vector.extract_strided_slice %172 {offsets = [0, 64], sizes = [16, 32], strides = [1, 1]} : vector<16x128xf32> to vector<16x32xf32>
    %176 = vector.extract_strided_slice %171 {offsets = [0, 96], sizes = [16, 32], strides = [1, 1]} : vector<16x128xf32> to vector<16x32xf32>
    %177 = arith.mulf %174, %136 : vector<16x32xf32>
    %178 = arith.mulf %173, %175 : vector<16x32xf32>
    %179 = arith.addf %177, %178 : vector<16x32xf32>
    %180 = math.tanh %179 : vector<16x32xf32>
    %181 = arith.mulf %176, %180 : vector<16x32xf32>
    %c4_i32 = arith.constant 4 : i32
    %c16_i32_45 = arith.constant 16 : i32
    %182 = arith.muli %c4_i32, %c16_i32_45 : i32
    %183 = tpu.assume_multiple %182, 16 : i32
    %c7_i32_46 = arith.constant 7 : i32
    %184 = arith.subi %c7_i32_46, %c4_i32 : i32
    %c16_i32_47 = arith.constant 16 : i32
    %185 = arith.muli %184, %c16_i32_47 : i32
    %186 = tpu.assume_multiple %185, 16 : i32
    %187 = arith.index_cast %183 : i32 to index
    %c0_48 = arith.constant 0 : index
    %188 = vector.load %arg9[%187, %c0_48] : memref<128x256xf32, #tpu.memory_space<vmem>>, vector<16x128xf32>
    %189 = arith.index_cast %186 : i32 to index
    %c128_49 = arith.constant 128 : index
    %190 = vector.load %arg9[%189, %c128_49] : memref<128x256xf32, #tpu.memory_space<vmem>>, vector<16x128xf32>
    %cst_50 = arith.constant dense<0.000000e+00> : vector<16x128xf32>
    %191 = tpu.matmul %166, %7, %cst_50 {dimension_numbers = #tpu.dot_dimension_numbers<[1], [0], [0], [1], [0, 0, 1, 1], [], []>} : vector<16x32xf32>, vector<32x128xf32>, vector<16x128xf32> -> vector<16x128xf32>
    %192 = arith.addf %188, %191 : vector<16x128xf32>
    %cst_51 = arith.constant dense<0.000000e+00> : vector<16x128xf32>
    %193 = tpu.matmul %181, %8, %cst_51 {dimension_numbers = #tpu.dot_dimension_numbers<[1], [0], [0], [1], [0, 0, 1, 1], [], []>} : vector<16x32xf32>, vector<32x128xf32>, vector<16x128xf32> -> vector<16x128xf32>
    %194 = arith.addf %190, %193 : vector<16x128xf32>
    %195 = arith.negf %192 : vector<16x128xf32>
    %196 = math.exp %195 : vector<16x128xf32>
    %cst_52 = arith.constant 1.000000e+00 : f32
    %197 = vector.broadcast %cst_52 : f32 to vector<16x128xf32>
    %198 = arith.addf %197, %196 : vector<16x128xf32>
    %199 = arith.divf %197, %198 : vector<16x128xf32>
    %200 = math.tanh %192 : vector<16x128xf32>
    %201 = vector.extract_strided_slice %199 {offsets = [0, 0], sizes = [16, 32], strides = [1, 1]} : vector<16x128xf32> to vector<16x32xf32>
    %202 = vector.extract_strided_slice %199 {offsets = [0, 32], sizes = [16, 32], strides = [1, 1]} : vector<16x128xf32> to vector<16x32xf32>
    %203 = vector.extract_strided_slice %200 {offsets = [0, 64], sizes = [16, 32], strides = [1, 1]} : vector<16x128xf32> to vector<16x32xf32>
    %204 = vector.extract_strided_slice %199 {offsets = [0, 96], sizes = [16, 32], strides = [1, 1]} : vector<16x128xf32> to vector<16x32xf32>
    %205 = arith.mulf %202, %164 : vector<16x32xf32>
    %206 = arith.mulf %201, %203 : vector<16x32xf32>
    %207 = arith.addf %205, %206 : vector<16x32xf32>
    %208 = math.tanh %207 : vector<16x32xf32>
    %209 = arith.mulf %204, %208 : vector<16x32xf32>
    %210 = arith.negf %194 : vector<16x128xf32>
    %211 = math.exp %210 : vector<16x128xf32>
    %cst_53 = arith.constant 1.000000e+00 : f32
    %212 = vector.broadcast %cst_53 : f32 to vector<16x128xf32>
    %213 = arith.addf %212, %211 : vector<16x128xf32>
    %214 = arith.divf %212, %213 : vector<16x128xf32>
    %215 = math.tanh %194 : vector<16x128xf32>
    %216 = vector.extract_strided_slice %214 {offsets = [0, 0], sizes = [16, 32], strides = [1, 1]} : vector<16x128xf32> to vector<16x32xf32>
    %217 = vector.extract_strided_slice %214 {offsets = [0, 32], sizes = [16, 32], strides = [1, 1]} : vector<16x128xf32> to vector<16x32xf32>
    %218 = vector.extract_strided_slice %215 {offsets = [0, 64], sizes = [16, 32], strides = [1, 1]} : vector<16x128xf32> to vector<16x32xf32>
    %219 = vector.extract_strided_slice %214 {offsets = [0, 96], sizes = [16, 32], strides = [1, 1]} : vector<16x128xf32> to vector<16x32xf32>
    %220 = arith.mulf %217, %179 : vector<16x32xf32>
    %221 = arith.mulf %216, %218 : vector<16x32xf32>
    %222 = arith.addf %220, %221 : vector<16x32xf32>
    %223 = math.tanh %222 : vector<16x32xf32>
    %224 = arith.mulf %219, %223 : vector<16x32xf32>
    %c5_i32 = arith.constant 5 : i32
    %c16_i32_54 = arith.constant 16 : i32
    %225 = arith.muli %c5_i32, %c16_i32_54 : i32
    %226 = tpu.assume_multiple %225, 16 : i32
    %c7_i32_55 = arith.constant 7 : i32
    %227 = arith.subi %c7_i32_55, %c5_i32 : i32
    %c16_i32_56 = arith.constant 16 : i32
    %228 = arith.muli %227, %c16_i32_56 : i32
    %229 = tpu.assume_multiple %228, 16 : i32
    %230 = arith.index_cast %226 : i32 to index
    %c0_57 = arith.constant 0 : index
    %231 = vector.load %arg9[%230, %c0_57] : memref<128x256xf32, #tpu.memory_space<vmem>>, vector<16x128xf32>
    %232 = arith.index_cast %229 : i32 to index
    %c128_58 = arith.constant 128 : index
    %233 = vector.load %arg9[%232, %c128_58] : memref<128x256xf32, #tpu.memory_space<vmem>>, vector<16x128xf32>
    %cst_59 = arith.constant dense<0.000000e+00> : vector<16x128xf32>
    %234 = tpu.matmul %209, %7, %cst_59 {dimension_numbers = #tpu.dot_dimension_numbers<[1], [0], [0], [1], [0, 0, 1, 1], [], []>} : vector<16x32xf32>, vector<32x128xf32>, vector<16x128xf32> -> vector<16x128xf32>
    %235 = arith.addf %231, %234 : vector<16x128xf32>
    %cst_60 = arith.constant dense<0.000000e+00> : vector<16x128xf32>
    %236 = tpu.matmul %224, %8, %cst_60 {dimension_numbers = #tpu.dot_dimension_numbers<[1], [0], [0], [1], [0, 0, 1, 1], [], []>} : vector<16x32xf32>, vector<32x128xf32>, vector<16x128xf32> -> vector<16x128xf32>
    %237 = arith.addf %233, %236 : vector<16x128xf32>
    %238 = arith.negf %235 : vector<16x128xf32>
    %239 = math.exp %238 : vector<16x128xf32>
    %cst_61 = arith.constant 1.000000e+00 : f32
    %240 = vector.broadcast %cst_61 : f32 to vector<16x128xf32>
    %241 = arith.addf %240, %239 : vector<16x128xf32>
    %242 = arith.divf %240, %241 : vector<16x128xf32>
    %243 = math.tanh %235 : vector<16x128xf32>
    %244 = vector.extract_strided_slice %242 {offsets = [0, 0], sizes = [16, 32], strides = [1, 1]} : vector<16x128xf32> to vector<16x32xf32>
    %245 = vector.extract_strided_slice %242 {offsets = [0, 32], sizes = [16, 32], strides = [1, 1]} : vector<16x128xf32> to vector<16x32xf32>
    %246 = vector.extract_strided_slice %243 {offsets = [0, 64], sizes = [16, 32], strides = [1, 1]} : vector<16x128xf32> to vector<16x32xf32>
    %247 = vector.extract_strided_slice %242 {offsets = [0, 96], sizes = [16, 32], strides = [1, 1]} : vector<16x128xf32> to vector<16x32xf32>
    %248 = arith.mulf %245, %207 : vector<16x32xf32>
    %249 = arith.mulf %244, %246 : vector<16x32xf32>
    %250 = arith.addf %248, %249 : vector<16x32xf32>
    %251 = math.tanh %250 : vector<16x32xf32>
    %252 = arith.mulf %247, %251 : vector<16x32xf32>
    %253 = arith.negf %237 : vector<16x128xf32>
    %254 = math.exp %253 : vector<16x128xf32>
    %cst_62 = arith.constant 1.000000e+00 : f32
    %255 = vector.broadcast %cst_62 : f32 to vector<16x128xf32>
    %256 = arith.addf %255, %254 : vector<16x128xf32>
    %257 = arith.divf %255, %256 : vector<16x128xf32>
    %258 = math.tanh %237 : vector<16x128xf32>
    %259 = vector.extract_strided_slice %257 {offsets = [0, 0], sizes = [16, 32], strides = [1, 1]} : vector<16x128xf32> to vector<16x32xf32>
    %260 = vector.extract_strided_slice %257 {offsets = [0, 32], sizes = [16, 32], strides = [1, 1]} : vector<16x128xf32> to vector<16x32xf32>
    %261 = vector.extract_strided_slice %258 {offsets = [0, 64], sizes = [16, 32], strides = [1, 1]} : vector<16x128xf32> to vector<16x32xf32>
    %262 = vector.extract_strided_slice %257 {offsets = [0, 96], sizes = [16, 32], strides = [1, 1]} : vector<16x128xf32> to vector<16x32xf32>
    %263 = arith.mulf %260, %222 : vector<16x32xf32>
    %264 = arith.mulf %259, %261 : vector<16x32xf32>
    %265 = arith.addf %263, %264 : vector<16x32xf32>
    %266 = math.tanh %265 : vector<16x32xf32>
    %267 = arith.mulf %262, %266 : vector<16x32xf32>
    %c6_i32 = arith.constant 6 : i32
    %c16_i32_63 = arith.constant 16 : i32
    %268 = arith.muli %c6_i32, %c16_i32_63 : i32
    %269 = tpu.assume_multiple %268, 16 : i32
    %c7_i32_64 = arith.constant 7 : i32
    %270 = arith.subi %c7_i32_64, %c6_i32 : i32
    %c16_i32_65 = arith.constant 16 : i32
    %271 = arith.muli %270, %c16_i32_65 : i32
    %272 = tpu.assume_multiple %271, 16 : i32
    %273 = arith.index_cast %269 : i32 to index
    %c0_66 = arith.constant 0 : index
    %274 = vector.load %arg9[%273, %c0_66] : memref<128x256xf32, #tpu.memory_space<vmem>>, vector<16x128xf32>
    %275 = arith.index_cast %272 : i32 to index
    %c128_67 = arith.constant 128 : index
    %276 = vector.load %arg9[%275, %c128_67] : memref<128x256xf32, #tpu.memory_space<vmem>>, vector<16x128xf32>
    %cst_68 = arith.constant dense<0.000000e+00> : vector<16x128xf32>
    %277 = tpu.matmul %252, %7, %cst_68 {dimension_numbers = #tpu.dot_dimension_numbers<[1], [0], [0], [1], [0, 0, 1, 1], [], []>} : vector<16x32xf32>, vector<32x128xf32>, vector<16x128xf32> -> vector<16x128xf32>
    %278 = arith.addf %274, %277 : vector<16x128xf32>
    %cst_69 = arith.constant dense<0.000000e+00> : vector<16x128xf32>
    %279 = tpu.matmul %267, %8, %cst_69 {dimension_numbers = #tpu.dot_dimension_numbers<[1], [0], [0], [1], [0, 0, 1, 1], [], []>} : vector<16x32xf32>, vector<32x128xf32>, vector<16x128xf32> -> vector<16x128xf32>
    %280 = arith.addf %276, %279 : vector<16x128xf32>
    %281 = arith.negf %278 : vector<16x128xf32>
    %282 = math.exp %281 : vector<16x128xf32>
    %cst_70 = arith.constant 1.000000e+00 : f32
    %283 = vector.broadcast %cst_70 : f32 to vector<16x128xf32>
    %284 = arith.addf %283, %282 : vector<16x128xf32>
    %285 = arith.divf %283, %284 : vector<16x128xf32>
    %286 = math.tanh %278 : vector<16x128xf32>
    %287 = vector.extract_strided_slice %285 {offsets = [0, 0], sizes = [16, 32], strides = [1, 1]} : vector<16x128xf32> to vector<16x32xf32>
    %288 = vector.extract_strided_slice %285 {offsets = [0, 32], sizes = [16, 32], strides = [1, 1]} : vector<16x128xf32> to vector<16x32xf32>
    %289 = vector.extract_strided_slice %286 {offsets = [0, 64], sizes = [16, 32], strides = [1, 1]} : vector<16x128xf32> to vector<16x32xf32>
    %290 = vector.extract_strided_slice %285 {offsets = [0, 96], sizes = [16, 32], strides = [1, 1]} : vector<16x128xf32> to vector<16x32xf32>
    %291 = arith.mulf %288, %250 : vector<16x32xf32>
    %292 = arith.mulf %287, %289 : vector<16x32xf32>
    %293 = arith.addf %291, %292 : vector<16x32xf32>
    %294 = math.tanh %293 : vector<16x32xf32>
    %295 = arith.mulf %290, %294 : vector<16x32xf32>
    %296 = arith.negf %280 : vector<16x128xf32>
    %297 = math.exp %296 : vector<16x128xf32>
    %cst_71 = arith.constant 1.000000e+00 : f32
    %298 = vector.broadcast %cst_71 : f32 to vector<16x128xf32>
    %299 = arith.addf %298, %297 : vector<16x128xf32>
    %300 = arith.divf %298, %299 : vector<16x128xf32>
    %301 = math.tanh %280 : vector<16x128xf32>
    %302 = vector.extract_strided_slice %300 {offsets = [0, 0], sizes = [16, 32], strides = [1, 1]} : vector<16x128xf32> to vector<16x32xf32>
    %303 = vector.extract_strided_slice %300 {offsets = [0, 32], sizes = [16, 32], strides = [1, 1]} : vector<16x128xf32> to vector<16x32xf32>
    %304 = vector.extract_strided_slice %301 {offsets = [0, 64], sizes = [16, 32], strides = [1, 1]} : vector<16x128xf32> to vector<16x32xf32>
    %305 = vector.extract_strided_slice %300 {offsets = [0, 96], sizes = [16, 32], strides = [1, 1]} : vector<16x128xf32> to vector<16x32xf32>
    %306 = arith.mulf %303, %265 : vector<16x32xf32>
    %307 = arith.mulf %302, %304 : vector<16x32xf32>
    %308 = arith.addf %306, %307 : vector<16x32xf32>
    %309 = math.tanh %308 : vector<16x32xf32>
    %310 = arith.mulf %305, %309 : vector<16x32xf32>
    %c7_i32_72 = arith.constant 7 : i32
    %c16_i32_73 = arith.constant 16 : i32
    %311 = arith.muli %c7_i32_72, %c16_i32_73 : i32
    %312 = tpu.assume_multiple %311, 16 : i32
    %c7_i32_74 = arith.constant 7 : i32
    %313 = arith.subi %c7_i32_74, %c7_i32_72 : i32
    %c16_i32_75 = arith.constant 16 : i32
    %314 = arith.muli %313, %c16_i32_75 : i32
    %315 = tpu.assume_multiple %314, 16 : i32
    %316 = arith.index_cast %312 : i32 to index
    %c0_76 = arith.constant 0 : index
    %317 = vector.load %arg9[%316, %c0_76] : memref<128x256xf32, #tpu.memory_space<vmem>>, vector<16x128xf32>
    %318 = arith.index_cast %315 : i32 to index
    %c128_77 = arith.constant 128 : index
    %319 = vector.load %arg9[%318, %c128_77] : memref<128x256xf32, #tpu.memory_space<vmem>>, vector<16x128xf32>
    %cst_78 = arith.constant dense<0.000000e+00> : vector<16x128xf32>
    %320 = tpu.matmul %295, %7, %cst_78 {dimension_numbers = #tpu.dot_dimension_numbers<[1], [0], [0], [1], [0, 0, 1, 1], [], []>} : vector<16x32xf32>, vector<32x128xf32>, vector<16x128xf32> -> vector<16x128xf32>
    %321 = arith.addf %317, %320 : vector<16x128xf32>
    %cst_79 = arith.constant dense<0.000000e+00> : vector<16x128xf32>
    %322 = tpu.matmul %310, %8, %cst_79 {dimension_numbers = #tpu.dot_dimension_numbers<[1], [0], [0], [1], [0, 0, 1, 1], [], []>} : vector<16x32xf32>, vector<32x128xf32>, vector<16x128xf32> -> vector<16x128xf32>
    %323 = arith.addf %319, %322 : vector<16x128xf32>
    %324 = arith.negf %321 : vector<16x128xf32>
    %325 = math.exp %324 : vector<16x128xf32>
    %cst_80 = arith.constant 1.000000e+00 : f32
    %326 = vector.broadcast %cst_80 : f32 to vector<16x128xf32>
    %327 = arith.addf %326, %325 : vector<16x128xf32>
    %328 = arith.divf %326, %327 : vector<16x128xf32>
    %329 = math.tanh %321 : vector<16x128xf32>
    %330 = vector.extract_strided_slice %328 {offsets = [0, 0], sizes = [16, 32], strides = [1, 1]} : vector<16x128xf32> to vector<16x32xf32>
    %331 = vector.extract_strided_slice %328 {offsets = [0, 32], sizes = [16, 32], strides = [1, 1]} : vector<16x128xf32> to vector<16x32xf32>
    %332 = vector.extract_strided_slice %329 {offsets = [0, 64], sizes = [16, 32], strides = [1, 1]} : vector<16x128xf32> to vector<16x32xf32>
    %333 = vector.extract_strided_slice %328 {offsets = [0, 96], sizes = [16, 32], strides = [1, 1]} : vector<16x128xf32> to vector<16x32xf32>
    %334 = arith.mulf %331, %293 : vector<16x32xf32>
    %335 = arith.mulf %330, %332 : vector<16x32xf32>
    %336 = arith.addf %334, %335 : vector<16x32xf32>
    %337 = math.tanh %336 : vector<16x32xf32>
    %338 = arith.mulf %333, %337 : vector<16x32xf32>
    %339 = arith.negf %323 : vector<16x128xf32>
    %340 = math.exp %339 : vector<16x128xf32>
    %cst_81 = arith.constant 1.000000e+00 : f32
    %341 = vector.broadcast %cst_81 : f32 to vector<16x128xf32>
    %342 = arith.addf %341, %340 : vector<16x128xf32>
    %343 = arith.divf %341, %342 : vector<16x128xf32>
    %344 = math.tanh %323 : vector<16x128xf32>
    %345 = vector.extract_strided_slice %343 {offsets = [0, 0], sizes = [16, 32], strides = [1, 1]} : vector<16x128xf32> to vector<16x32xf32>
    %346 = vector.extract_strided_slice %343 {offsets = [0, 32], sizes = [16, 32], strides = [1, 1]} : vector<16x128xf32> to vector<16x32xf32>
    %347 = vector.extract_strided_slice %344 {offsets = [0, 64], sizes = [16, 32], strides = [1, 1]} : vector<16x128xf32> to vector<16x32xf32>
    %348 = vector.extract_strided_slice %343 {offsets = [0, 96], sizes = [16, 32], strides = [1, 1]} : vector<16x128xf32> to vector<16x32xf32>
    %349 = arith.mulf %346, %308 : vector<16x32xf32>
    %350 = arith.mulf %345, %347 : vector<16x32xf32>
    %351 = arith.addf %349, %350 : vector<16x32xf32>
    %352 = math.tanh %351 : vector<16x32xf32>
    %353 = arith.mulf %348, %352 : vector<16x32xf32>
    %c8_i32 = arith.constant 8 : i32
    %354 = vector.extract_strided_slice %338 {offsets = [0, 0], sizes = [8, 32], strides = [1, 1]} : vector<16x32xf32> to vector<8x32xf32>
    %355 = vector.extract_strided_slice %338 {offsets = [8, 0], sizes = [8, 32], strides = [1, 1]} : vector<16x32xf32> to vector<8x32xf32>
    %356 = vector.extract_strided_slice %353 {offsets = [0, 0], sizes = [8, 32], strides = [1, 1]} : vector<16x32xf32> to vector<8x32xf32>
    %357 = vector.extract_strided_slice %353 {offsets = [8, 0], sizes = [8, 32], strides = [1, 1]} : vector<16x32xf32> to vector<8x32xf32>
    %c0_82 = arith.constant 0 : index
    %c0_83 = arith.constant 0 : index
    %358 = vector.load %arg4[%c0_82, %c0_83] : memref<128x64xf32, #tpu.memory_space<vmem>>, vector<32x64xf32>
    %cst_84 = arith.constant dense<0.000000e+00> : vector<8x64xf32>
    %359 = tpu.matmul %354, %358, %cst_84 {dimension_numbers = #tpu.dot_dimension_numbers<[1], [0], [0], [1], [0, 0, 1, 1], [], []>} : vector<8x32xf32>, vector<32x64xf32>, vector<8x64xf32> -> vector<8x64xf32>
    %c32 = arith.constant 32 : index
    %c0_85 = arith.constant 0 : index
    %360 = vector.load %arg4[%c32, %c0_85] : memref<128x64xf32, #tpu.memory_space<vmem>>, vector<32x64xf32>
    %cst_86 = arith.constant dense<0.000000e+00> : vector<8x64xf32>
    %361 = tpu.matmul %356, %360, %cst_86 {dimension_numbers = #tpu.dot_dimension_numbers<[1], [0], [0], [1], [0, 0, 1, 1], [], []>} : vector<8x32xf32>, vector<32x64xf32>, vector<8x64xf32> -> vector<8x64xf32>
    %362 = arith.addf %359, %361 : vector<8x64xf32>
    %c64 = arith.constant 64 : index
    %c0_87 = arith.constant 0 : index
    %363 = vector.load %arg4[%c64, %c0_87] : memref<128x64xf32, #tpu.memory_space<vmem>>, vector<32x64xf32>
    %cst_88 = arith.constant dense<0.000000e+00> : vector<8x64xf32>
    %364 = tpu.matmul %355, %363, %cst_88 {dimension_numbers = #tpu.dot_dimension_numbers<[1], [0], [0], [1], [0, 0, 1, 1], [], []>} : vector<8x32xf32>, vector<32x64xf32>, vector<8x64xf32> -> vector<8x64xf32>
    %365 = arith.addf %362, %364 : vector<8x64xf32>
    %c96 = arith.constant 96 : index
    %c0_89 = arith.constant 0 : index
    %366 = vector.load %arg4[%c96, %c0_89] : memref<128x64xf32, #tpu.memory_space<vmem>>, vector<32x64xf32>
    %cst_90 = arith.constant dense<0.000000e+00> : vector<8x64xf32>
    %367 = tpu.matmul %357, %366, %cst_90 {dimension_numbers = #tpu.dot_dimension_numbers<[1], [0], [0], [1], [0, 0, 1, 1], [], []>} : vector<8x32xf32>, vector<32x64xf32>, vector<8x64xf32> -> vector<8x64xf32>
    %368 = arith.addf %365, %367 : vector<8x64xf32>
    %c0_91 = arith.constant 0 : index
    %c0_92 = arith.constant 0 : index
    %369 = vector.load %arg5[%c0_91, %c0_92] : memref<1x64xf32, #tpu.memory_space<vmem>>, vector<1x64xf32>
    %370 = vector.broadcast %369 : vector<1x64xf32> to vector<8x64xf32>
    %371 = arith.addf %368, %370 : vector<8x64xf32>
    %372 = math.tanh %371 : vector<8x64xf32>
    %c0_93 = arith.constant 0 : index
    %c0_94 = arith.constant 0 : index
    %373 = vector.load %arg6[%c0_93, %c0_94] : memref<64x128xf32, #tpu.memory_space<vmem>>, vector<64x128xf32>
    %cst_95 = arith.constant dense<0.000000e+00> : vector<8x128xf32>
    %374 = tpu.matmul %372, %373, %cst_95 {dimension_numbers = #tpu.dot_dimension_numbers<[1], [0], [0], [1], [0, 0, 1, 1], [], []>} : vector<8x64xf32>, vector<64x128xf32>, vector<8x128xf32> -> vector<8x128xf32>
    %c0_96 = arith.constant 0 : index
    %c0_97 = arith.constant 0 : index
    %375 = vector.load %arg7[%c0_96, %c0_97] : memref<1x128xf32, #tpu.memory_space<vmem>>, vector<1x128xf32>
    %376 = vector.broadcast %375 : vector<1x128xf32> to vector<8x128xf32>
    %377 = arith.addf %374, %376 : vector<8x128xf32>
    %c0_98 = arith.constant 0 : index
    %c0_99 = arith.constant 0 : index
    %378 = vector.load %arg8[%c0_98, %c0_99] : memref<8x128xf32, #tpu.memory_space<vmem>>, vector<8x128xf32>
    tpu.vector_store %arg8[%c0_98, %c0_99], %377 {strides = array<i32>} : memref<8x128xf32, #tpu.memory_space<vmem>>, vector<8x128xf32>,
    return
  }
}

</mosaic_0001>

<llo_original>
// kernel: lstm_classifier_forward.1
$region0: #{lstm_classifier_forward.1}
  #allocation0 [shape = 'u32[]', space=smem, size = 0x4, offset = 0x4, fixed_abs, tag = 'smem constant byte address 0x4 - core index']
  #allocation1 [shape = 'u32[72,128]{1,0:T(1,128)}', space=vmem, size = 0x9000, scoped, tag = 'internal scratch']
  #allocation2 [shape = 'f32[128,256]{1,0:T(8,128)}', space=vmem, size = 0x20000, scoped, tag = 'scratch operand']
  %s0 = inlined_call_operand.vmem [shape: f32[128,32], index: 0, kind: input, shape index: {}]
  %s1 = inlined_call_operand.vmem [shape: f32[32,256], index: 1, kind: input, shape index: {}]
  %s2 = inlined_call_operand.vmem [shape: f32[32,256], index: 2, kind: input, shape index: {}]
  %s3 = inlined_call_operand.vmem [shape: f32[1,256], index: 3, kind: input, shape index: {}]
  %s4 = inlined_call_operand.vmem [shape: f32[128,64], index: 4, kind: input, shape index: {}]
  %s5 = inlined_call_operand.vmem [shape: f32[1,64], index: 5, kind: input, shape index: {}]
  %s6 = inlined_call_operand.vmem [shape: f32[64,128], index: 6, kind: input, shape index: {}]
  %s7 = inlined_call_operand.vmem [shape: f32[1,128], index: 7, kind: input, shape index: {}]
  %s8 = inlined_call_operand.hbm [shape: f32[8,128], index: 8, kind: output, shape index: {}]
  %s9 = sld [smem:[#allocation0]]
  $region42: #{lstm_classifier_forward.1} parent=0
    _
  %s11 = ssub.s32 1, %s9
  %s12 = scalar_select 0, %s11, %s9
  $region1: #{lstm_classifier_forward.1} parent=0
    #allocation3 [shape = 'u8[4096]{0}', space=vmem, size = 0x1000, scoped, tag = 'output window, operand 0, single buffered']
    #allocation4 [shape = 's32[1]{0}', space=sflag, size = 0x4, scoped, tag = 'scoped memory for lstm_classifier_forward.1']
    %13 = vsyncpa [#allocation4], 0
    // Predicated region
    $region2: #{lstm_classifier_forward.1} parent=1 // pred_check
      _
    $region3: #{lstm_classifier_forward.1} parent=1 // pred_check_branch
      %15 = sbr.rel (0) target = $region5
    $region4: #{lstm_classifier_forward.1} parent=1 // pred_region
      _
    $region5: #{lstm_classifier_forward.1} parent=1 // pred_fallthru
      _
    // Predicated region
    $region6: #{lstm_classifier_forward.1} parent=1 // pred_check
      _
    $region7: #{lstm_classifier_forward.1} parent=1 // pred_check_branch
      %17 = sbr.rel (0) target = $region9
    $region8: #{lstm_classifier_forward.1} parent=1 // pred_region
      _
    $region9: #{lstm_classifier_forward.1} parent=1 // pred_fallthru
      _
    // Predicated region
    $region10: #{lstm_classifier_forward.1} parent=1 // pred_check
      _
    $region11: #{lstm_classifier_forward.1} parent=1 // pred_check_branch
      %19 = sbr.rel (0) target = $region13
    $region12: #{lstm_classifier_forward.1} parent=1 // pred_region
      _
    $region13: #{lstm_classifier_forward.1} parent=1 // pred_fallthru
      _
    // Predicated region
    $region14: #{lstm_classifier_forward.1} parent=1 // pred_check
      _
    $region15: #{lstm_classifier_forward.1} parent=1 // pred_check_branch
      %21 = sbr.rel (0) target = $region17
    $region16: #{lstm_classifier_forward.1} parent=1 // pred_region
      _
    $region17: #{lstm_classifier_forward.1} parent=1 // pred_fallthru
      _
    // Predicated region
    $region18: #{lstm_classifier_forward.1} parent=1 // pred_check
      _
    $region19: #{lstm_classifier_forward.1} parent=1 // pred_check_branch
      %23 = sbr.rel (0) target = $region21
    $region20: #{lstm_classifier_forward.1} parent=1 // pred_region
      _
    $region21: #{lstm_classifier_forward.1} parent=1 // pred_fallthru
      _
    // Predicated region
    $region22: #{lstm_classifier_forward.1} parent=1 // pred_check
      _
    $region23: #{lstm_classifier_forward.1} parent=1 // pred_check_branch
      %25 = sbr.rel (0) target = $region25
    $region24: #{lstm_classifier_forward.1} parent=1 // pred_region
      _
    $region25: #{lstm_classifier_forward.1} parent=1 // pred_fallthru
      _
    // Predicated region
    $region26: #{lstm_classifier_forward.1} parent=1 // pred_check
      _
    $region27: #{lstm_classifier_forward.1} parent=1 // pred_check_branch
      %27 = sbr.rel (0) target = $region29
    $region28: #{lstm_classifier_forward.1} parent=1 // pred_region
      _
    $region29: #{lstm_classifier_forward.1} parent=1 // pred_fallthru
      _
    // Predicated region
    $region30: #{lstm_classifier_forward.1} parent=1 // pred_check
      _
    $region31: #{lstm_classifier_forward.1} parent=1 // pred_check_branch
      %29 = sbr.rel (0) target = $region33
    $region32: #{lstm_classifier_forward.1} parent=1 // pred_region
      _
    $region33: #{lstm_classifier_forward.1} parent=1 // pred_fallthru
      _
    %v30 = vld [vmem:[%s0] sm:$0xff]
    %v31 = vld [vmem:[%s0 + $0x8] sm:$0xff]
    %v32 = vld [vmem:[%s0 + $0x10] sm:$0xff]
    %v33 = vld [vmem:[%s0 + $0x18] sm:$0xff]
    %v34 = vld [vmem:[%s0 + $0x20] sm:$0xff]
    %v35 = vld [vmem:[%s0 + $0x28] sm:$0xff]
    %v36 = vld [vmem:[%s0 + $0x30] sm:$0xff]
    %v37 = vld [vmem:[%s0 + $0x38] sm:$0xff]
    %v38 = vld [vmem:[%s0 + $0x40] sm:$0xff]
    %v39 = vld [vmem:[%s0 + $0x48] sm:$0xff]
    %v40 = vld [vmem:[%s0 + $0x50] sm:$0xff]
    %v41 = vld [vmem:[%s0 + $0x58] sm:$0xff]
    %v42 = vld [vmem:[%s0 + $0x60] sm:$0xff]
    %v43 = vld [vmem:[%s0 + $0x68] sm:$0xff]
    %v44 = vld [vmem:[%s0 + $0x70] sm:$0xff]
    %v45 = vld [vmem:[%s0 + $0x78] sm:$0xff]
    %v46 = vld [vmem:[%s1] sm:$0xff]
    %v47 = vld [vmem:[%s1 + $0x8] sm:$0xff]
    %v48 = vld [vmem:[%s1 + $0x10] sm:$0xff]
    %v49 = vld [vmem:[%s1 + $0x18] sm:$0xff]
    %v50 = vld [vmem:[%s1 + $0x20] sm:$0xff]
    %v51 = vld [vmem:[%s1 + $0x28] sm:$0xff]
    %v52 = vld [vmem:[%s1 + $0x30] sm:$0xff]
    %v53 = vld [vmem:[%s1 + $0x38] sm:$0xff]
    %v54 = vld [vmem:[%s3] sm:$0x3]
    %v56 = vperm.slane %v54, 0
    %v57 = vperm.slane %v54, 1
    %vm60 = vcmask 261120
    %v62 = vsel %vm60, %v30, 0
    %v65 = vsel %vm60, %v31, 0
    %v68 = vsel %vm60, %v32, 0
    %v71 = vsel %vm60, %v33, 0
    %v74 = vsel %vm60, %v34, 0
    %v77 = vsel %vm60, %v35, 0
    %v80 = vsel %vm60, %v36, 0
    %v83 = vsel %vm60, %v37, 0
    %v86 = vsel %vm60, %v38, 0
    %v89 = vsel %vm60, %v39, 0
    %v92 = vsel %vm60, %v40, 0
    %v95 = vsel %vm60, %v41, 0
    %v98 = vsel %vm60, %v42, 0
    %v101 = vsel %vm60, %v43, 0
    %v104 = vsel %vm60, %v44, 0
    %v107 = vsel %vm60, %v45, 0
    %109 = vmatpush.msra.mxu0 0.0
    %110 = vmatpush.msra.mxu0 0.0
    %111 = vmatpush.msra.mxu0 0.0
    %112 = vmatpush.msra.mxu0 0.0
    %113 = vmatpush.msra.mxu0 0.0
    %114 = vmatpush.msra.mxu0 0.0
    %115 = vmatpush.msra.mxu0 0.0
    %116 = vmatpush.msra.mxu0 0.0
    %117 = vmatpush.msra.mxu0 0.0
    %118 = vmatpush.msra.mxu0 0.0
    %119 = vmatpush.msra.mxu0 0.0
    %120 = vmatpush.msra.mxu0 0.0
    %121 = vmatpush.msra.mxu0 %v52
    %122 = vmatpush.msra.mxu0 %v50
    %123 = vmatpush.msra.mxu0 %v48
    %124 = vmatpush.msra.mxu0 %v46
    %125 = vmatmul.f32.gmra.mxu0 %v62
    %v126 = vpop.f32.mrf.mxu0
    %v127 = vadd.f32 %v56, %v126
    %128 = vmatmul.f32.gmra.mxu0 %v65
    %v129 = vpop.f32.mrf.mxu0
    %v130 = vadd.f32 %v56, %v129
    %131 = vmatmul.f32.gmra.mxu0 %v68
    %v132 = vpop.f32.mrf.mxu0
    %v133 = vadd.f32 %v56, %v132
    %134 = vmatmul.f32.gmra.mxu0 %v71
    %v135 = vpop.f32.mrf.mxu0
    %v136 = vadd.f32 %v56, %v135
    %137 = vmatmul.f32.gmra.mxu0 %v74
    %v138 = vpop.f32.mrf.mxu0
    %v139 = vadd.f32 %v56, %v138
    %140 = vmatmul.f32.gmra.mxu0 %v77
    %v141 = vpop.f32.mrf.mxu0
    %v142 = vadd.f32 %v56, %v141
    %143 = vmatmul.f32.gmra.mxu0 %v80
    %v144 = vpop.f32.mrf.mxu0
    %v145 = vadd.f32 %v56, %v144
    %146 = vmatmul.f32.gmra.mxu0 %v83
    %v147 = vpop.f32.mrf.mxu0
    %v148 = vadd.f32 %v56, %v147
    %149 = vmatmul.f32.gmra.mxu0 %v86
    %v150 = vpop.f32.mrf.mxu0
    %v151 = vadd.f32 %v56, %v150
    %152 = vmatmul.f32.gmra.mxu0 %v89
    %v153 = vpop.f32.mrf.mxu0
    %v154 = vadd.f32 %v56, %v153
    %155 = vmatmul.f32.gmra.mxu0 %v92
    %v156 = vpop.f32.mrf.mxu0
    %v157 = vadd.f32 %v56, %v156
    %158 = vmatmul.f32.gmra.mxu0 %v95
    %v159 = vpop.f32.mrf.mxu0
    %v160 = vadd.f32 %v56, %v159
    %161 = vmatmul.f32.gmra.mxu0 %v98
    %v162 = vpop.f32.mrf.mxu0
    %v163 = vadd.f32 %v56, %v162
    %164 = vmatmul.f32.gmra.mxu0 %v101
    %v165 = vpop.f32.mrf.mxu0
    %v166 = vadd.f32 %v56, %v165
    %167 = vmatmul.f32.gmra.mxu0 %v104
    %v168 = vpop.f32.mrf.mxu0
    %v169 = vadd.f32 %v56, %v168
    %170 = vmatmul.f32.gmra.mxu0 %v107
    %v171 = vpop.f32.mrf.mxu0
    %v172 = vadd.f32 %v56, %v171
    %173 = vdwg.mxu0
    %174 = vmatpush.msra.mxu0 0.0
    %175 = vmatpush.msra.mxu0 0.0
    %176 = vmatpush.msra.mxu0 0.0
    %177 = vmatpush.msra.mxu0 0.0
    %178 = vmatpush.msra.mxu0 0.0
    %179 = vmatpush.msra.mxu0 0.0
    %180 = vmatpush.msra.mxu0 0.0
    %181 = vmatpush.msra.mxu0 0.0
    %182 = vmatpush.msra.mxu0 0.0
    %183 = vmatpush.msra.mxu0 0.0
    %184 = vmatpush.msra.mxu0 0.0
    %185 = vmatpush.msra.mxu0 0.0
    %186 = vmatpush.msra.mxu0 %v53
    %187 = vmatpush.msra.mxu0 %v51
    %188 = vmatpush.msra.mxu0 %v49
    %189 = vmatpush.msra.mxu0 %v47
    %190 = vmatmul.f32.gmra.mxu0 %v62
    %v191 = vpop.f32.mrf.mxu0
    %v192 = vadd.f32 %v57, %v191
    %193 = vmatmul.f32.gmra.mxu0 %v65
    %v194 = vpop.f32.mrf.mxu0
    %v195 = vadd.f32 %v57, %v194
    %196 = vmatmul.f32.gmra.mxu0 %v68
    %v197 = vpop.f32.mrf.mxu0
    %v198 = vadd.f32 %v57, %v197
    %199 = vmatmul.f32.gmra.mxu0 %v71
    %v200 = vpop.f32.mrf.mxu0
    %v201 = vadd.f32 %v57, %v200
    %202 = vmatmul.f32.gmra.mxu0 %v74
    %v203 = vpop.f32.mrf.mxu0
    %v204 = vadd.f32 %v57, %v203
    %205 = vmatmul.f32.gmra.mxu0 %v77
    %v206 = vpop.f32.mrf.mxu0
    %v207 = vadd.f32 %v57, %v206
    %208 = vmatmul.f32.gmra.mxu0 %v80
    %v209 = vpop.f32.mrf.mxu0
    %v210 = vadd.f32 %v57, %v209
    %211 = vmatmul.f32.gmra.mxu0 %v83
    %v212 = vpop.f32.mrf.mxu0
    %v213 = vadd.f32 %v57, %v212
    %214 = vmatmul.f32.gmra.mxu0 %v86
    %v215 = vpop.f32.mrf.mxu0
    %v216 = vadd.f32 %v57, %v215
    %217 = vmatmul.f32.gmra.mxu0 %v89
    %v218 = vpop.f32.mrf.mxu0
    %v219 = vadd.f32 %v57, %v218
    %220 = vmatmul.f32.gmra.mxu0 %v92
    %v221 = vpop.f32.mrf.mxu0
    %v222 = vadd.f32 %v57, %v221
    %223 = vmatmul.f32.gmra.mxu0 %v95
    %v224 = vpop.f32.mrf.mxu0
    %v225 = vadd.f32 %v57, %v224
    %226 = vmatmul.f32.gmra.mxu0 %v98
    %v227 = vpop.f32.mrf.mxu0
    %v228 = vadd.f32 %v57, %v227
    %229 = vmatmul.f32.gmra.mxu0 %v101
    %v230 = vpop.f32.mrf.mxu0
    %v231 = vadd.f32 %v57, %v230
    %232 = vmatmul.f32.gmra.mxu0 %v104
    %v233 = vpop.f32.mrf.mxu0
    %v234 = vadd.f32 %v57, %v233
    %235 = vmatmul.f32.gmra.mxu0 %v107
    %v236 = vpop.f32.mrf.mxu0
    %v237 = vadd.f32 %v57, %v236
    %238 = vdwg.mxu0
    %239 = vst [vmem:[#allocation2] sm:$0xff] %v127
    %240 = vst [vmem:[#allocation2 + $0x8] sm:$0xff] %v192
    %241 = vst [vmem:[#allocation2 + $0x10] sm:$0xff] %v130
    %242 = vst [vmem:[#allocation2 + $0x18] sm:$0xff] %v195
    %243 = vst [vmem:[#allocation2 + $0x20] sm:$0xff] %v133
    %244 = vst [vmem:[#allocation2 + $0x28] sm:$0xff] %v198
    %245 = vst [vmem:[#allocation2 + $0x30] sm:$0xff] %v136
    %246 = vst [vmem:[#allocation2 + $0x38] sm:$0xff] %v201
    %247 = vst [vmem:[#allocation2 + $0x40] sm:$0xff] %v139
    %248 = vst [vmem:[#allocation2 + $0x48] sm:$0xff] %v204
    %249 = vst [vmem:[#allocation2 + $0x50] sm:$0xff] %v142
    %250 = vst [vmem:[#allocation2 + $0x58] sm:$0xff] %v207
    %251 = vst [vmem:[#allocation2 + $0x60] sm:$0xff] %v145
    %252 = vst [vmem:[#allocation2 + $0x68] sm:$0xff] %v210
    %253 = vst [vmem:[#allocation2 + $0x70] sm:$0xff] %v148
    %254 = vst [vmem:[#allocation2 + $0x78] sm:$0xff] %v213
    %255 = vst [vmem:[#allocation2 + $0x80] sm:$0xff] %v151
    %256 = vst [vmem:[#allocation2 + $0x88] sm:$0xff] %v216
    %257 = vst [vmem:[#allocation2 + $0x90] sm:$0xff] %v154
    %258 = vst [vmem:[#allocation2 + $0x98] sm:$0xff] %v219
    %259 = vst [vmem:[#allocation2 + $0xa0] sm:$0xff] %v157
    %260 = vst [vmem:[#allocation2 + $0xa8] sm:$0xff] %v222
    %261 = vst [vmem:[#allocation2 + $0xb0] sm:$0xff] %v160
    %262 = vst [vmem:[#allocation2 + $0xb8] sm:$0xff] %v225
    %263 = vst [vmem:[#allocation2 + $0xc0] sm:$0xff] %v163
    %264 = vst [vmem:[#allocation2 + $0xc8] sm:$0xff] %v228
    %265 = vst [vmem:[#allocation2 + $0xd0] sm:$0xff] %v166
    %266 = vst [vmem:[#allocation2 + $0xd8] sm:$0xff] %v231
    %267 = vst [vmem:[#allocation2 + $0xe0] sm:$0xff] %v169
    %268 = vst [vmem:[#allocation2 + $0xe8] sm:$0xff] %v234
    %269 = vst [vmem:[#allocation2 + $0xf0] sm:$0xff] %v172
    %270 = vst [vmem:[#allocation2 + $0xf8] sm:$0xff] %v237
    %v271 = vld [vmem:[%s2] sm:$0xff]
    %v272 = vld [vmem:[%s2 + $0x10] sm:$0xff]
    %v273 = vld [vmem:[%s2 + $0x20] sm:$0xff]
    %v274 = vld [vmem:[%s2 + $0x30] sm:$0xff]
    %v275 = vld [vmem:[%s2 + $0x8] sm:$0xff]
    %v276 = vld [vmem:[%s2 + $0x18] sm:$0xff]
    %v277 = vld [vmem:[%s2 + $0x28] sm:$0xff]
    %v278 = vld [vmem:[%s2 + $0x38] sm:$0xff]
    %s279 = smul.u32 0, 2
    %s280 = smul.addr %s279, 8
    %s281 = scalar_lea.vmem [#allocation2], %s280
    %v282 = vld [vmem:[%s281] sm:$0xff]
    %v283 = vld [vmem:[%s281 + $0x10] sm:$0xff]
    %s284 = smul.u32 14, 2
    %s285 = smul.addr %s284, 8
    %s286 = scalar_lea.vmem [#allocation2], %s285
    %v287 = vld [vmem:[%s286 + $0x8] sm:$0xff]
    %v288 = vld [vmem:[%s286 + $0x18] sm:$0xff]
    %v290 = vsel %vm60, 0.0, 0
    %292 = vmatpush.msra.mxu0 0.0
    %293 = vmatpush.msra.mxu0 0.0
    %294 = vmatpush.msra.mxu0 0.0
    %295 = vmatpush.msra.mxu0 0.0
    %296 = vmatpush.msra.mxu0 0.0
    %297 = vmatpush.msra.mxu0 0.0
    %298 = vmatpush.msra.mxu0 0.0
    %299 = vmatpush.msra.mxu0 0.0
    %300 = vmatpush.msra.mxu0 0.0
    %301 = vmatpush.msra.mxu0 0.0
    %302 = vmatpush.msra.mxu0 0.0
    %303 = vmatpush.msra.mxu0 0.0
    %304 = vmatpush.msra.mxu0 %v274
    %305 = vmatpush.msra.mxu0 %v273
    %306 = vmatpush.msra.mxu0 %v272
    %307 = vmatpush.msra.mxu0 %v271
    %308 = vmatmul.f32.gmra.mxu0 %v290
    %v309 = vpop.f32.mrf.mxu0
    %v310 = vadd.f32 0.0, %v309
    %311 = vmatmul.f32.gmra.mxu0 %v290
    %v312 = vpop.f32.mrf.mxu0
    %v313 = vadd.f32 0.0, %v312
    %314 = vdwg.mxu0
    %v315 = vadd.f32 %v282, %v310
    %v316 = vadd.f32 %v283, %v313
    %317 = vmatpush.msra.mxu0 0.0
    %318 = vmatpush.msra.mxu0 0.0
    %319 = vmatpush.msra.mxu0 0.0
    %320 = vmatpush.msra.mxu0 0.0
    %321 = vmatpush.msra.mxu0 0.0
    %322 = vmatpush.msra.mxu0 0.0
    %323 = vmatpush.msra.mxu0 0.0
    %324 = vmatpush.msra.mxu0 0.0
    %325 = vmatpush.msra.mxu0 0.0
    %326 = vmatpush.msra.mxu0 0.0
    %327 = vmatpush.msra.mxu0 0.0
    %328 = vmatpush.msra.mxu0 0.0
    %329 = vmatpush.msra.mxu0 %v278
    %330 = vmatpush.msra.mxu0 %v277
    %331 = vmatpush.msra.mxu0 %v276
    %332 = vmatpush.msra.mxu0 %v275
    %333 = vmatmul.f32.gmra.mxu0 %v290
    %v334 = vpop.f32.mrf.mxu0
    %v335 = vadd.f32 0.0, %v334
    %336 = vmatmul.f32.gmra.mxu0 %v290
    %v337 = vpop.f32.mrf.mxu0
    %v338 = vadd.f32 0.0, %v337
    %339 = vdwg.mxu0
    %v340 = vadd.f32 %v287, %v335
    %v341 = vadd.f32 %v288, %v338
    %v342 = vxor.u32 %v315, 2147483648
    %v343 = vxor.u32 %v316, 2147483648
    %v344 = vmul.f32 %v342, 1.442695
    %v345 = vpow.pop %v344
    %v346 = vmul.f32 %v343, 1.442695
    %v347 = vpow.pop %v346
    %v348 = vadd.f32 %v345, 1.0
    %v349 = vadd.f32 %v347, 1.0
    %v350 = vrcp.pop %v348
    %v351 = vmul.f32 %v348, %v350
    %v352 = vsub.f32 1.0, %v351
    %v353 = vmul.f32 %v350, %v352
    %v354 = vadd.f32 %v350, %v353
    %vm355 = vweird.f32 %v348
    %vm356 = vweird.f32 %v350
    %vm357 = vmor %vm355, %vm356
    %v358 = vsel %vm357, %v350, %v354
    %v359 = vand.u32 2147483647, %v348
    %vm360 = vcmp.eq.f32.partialorder %v359, 8.507059e+37
    %v361 = vand.u32 %v348, 2147483648
    %v362 = vor.u32 1.1754944e-38, %v361
    %v363 = vsel %vm360, %v362, %v358
    %v364 = vmul.f32 1.0, %v363
    %v365 = vrcp.pop %v349
    %v366 = vmul.f32 %v349, %v365
    %v367 = vsub.f32 1.0, %v366
    %v368 = vmul.f32 %v365, %v367
    %v369 = vadd.f32 %v365, %v368
    %vm370 = vweird.f32 %v349
    %vm371 = vweird.f32 %v365
    %vm372 = vmor %vm370, %vm371
    %v373 = vsel %vm372, %v365, %v369
    %v374 = vand.u32 2147483647, %v349
    %vm375 = vcmp.eq.f32.partialorder %v374, 8.507059e+37
    %v376 = vand.u32 %v349, 2147483648
    %v377 = vor.u32 1.1754944e-38, %v376
    %v378 = vsel %vm375, %v377, %v373
    %v379 = vmul.f32 1.0, %v378
    %v380 = vtanh.pop %v315
    %v381 = vtanh.pop %v316
    %v382 = vmul.f32 %v364, 0.0
    %v383 = vmul.f32 %v379, 0.0
    %386 = vrot.lane.b32.xlu0 %v380, 64
    %v387 = vpop.permute.xlu0 %386
    %388 = vrot.lane.b32.xlu0 %v381, 64
    %v389 = vpop.permute.xlu0 %388
    %v392 = vmul.f32 %v364, %v387
    %v393 = vmul.f32 %v379, %v389
    %396 = vrot.lane.b32.xlu0 %v392, 32
    %v397 = vpop.permute.xlu0 %396
    %398 = vrot.lane.b32.xlu0 %v393, 32
    %v399 = vpop.permute.xlu0 %398
    %v402 = vadd.f32 %v382, %v397
    %v403 = vadd.f32 %v383, %v399
    %v404 = vtanh.pop %v402
    %v405 = vtanh.pop %v403
    %408 = vrot.lane.b32.xlu0 %v404, 64
    %v409 = vpop.permute.xlu0 %408
    %410 = vrot.lane.b32.xlu0 %v405, 64
    %v411 = vpop.permute.xlu0 %410
    %v414 = vmul.f32 %v364, %v409
    %v415 = vmul.f32 %v379, %v411
    %v416 = vxor.u32 %v340, 2147483648
    %v417 = vxor.u32 %v341, 2147483648
    %v418 = vmul.f32 %v416, 1.442695
    %v419 = vpow.pop %v418
    %v420 = vmul.f32 %v417, 1.442695
    %v421 = vpow.pop %v420
    %v422 = vadd.f32 %v419, 1.0
    %v423 = vadd.f32 %v421, 1.0
    %v424 = vrcp.pop %v422
    %v425 = vmul.f32 %v422, %v424
    %v426 = vsub.f32 1.0, %v425
    %v427 = vmul.f32 %v424, %v426
    %v428 = vadd.f32 %v424, %v427
    %vm429 = vweird.f32 %v422
    %vm430 = vweird.f32 %v424
    %vm431 = vmor %vm429, %vm430
    %v432 = vsel %vm431, %v424, %v428
    %v433 = vand.u32 2147483647, %v422
    %vm434 = vcmp.eq.f32.partialorder %v433, 8.507059e+37
    %v435 = vand.u32 %v422, 2147483648
    %v436 = vor.u32 1.1754944e-38, %v435
    %v437 = vsel %vm434, %v436, %v432
    %v438 = vmul.f32 1.0, %v437
    %v439 = vrcp.pop %v423
    %v440 = vmul.f32 %v423, %v439
    %v441 = vsub.f32 1.0, %v440
    %v442 = vmul.f32 %v439, %v441
    %v443 = vadd.f32 %v439, %v442
    %vm444 = vweird.f32 %v423
    %vm445 = vweird.f32 %v439
    %vm446 = vmor %vm444, %vm445
    %v447 = vsel %vm446, %v439, %v443
    %v448 = vand.u32 2147483647, %v423
    %vm449 = vcmp.eq.f32.partialorder %v448, 8.507059e+37
    %v450 = vand.u32 %v423, 2147483648
    %v451 = vor.u32 1.1754944e-38, %v450
    %v452 = vsel %vm449, %v451, %v447
    %v453 = vmul.f32 1.0, %v452
    %v454 = vtanh.pop %v340
    %v455 = vtanh.pop %v341
    %v456 = vmul.f32 %v438, 0.0
    %v457 = vmul.f32 %v453, 0.0
    %460 = vrot.lane.b32.xlu0 %v454, 64
    %v461 = vpop.permute.xlu0 %460
    %462 = vrot.lane.b32.xlu0 %v455, 64
    %v463 = vpop.permute.xlu0 %462
    %v466 = vmul.f32 %v438, %v461
    %v467 = vmul.f32 %v453, %v463
    %470 = vrot.lane.b32.xlu0 %v466, 32
    %v471 = vpop.permute.xlu0 %470
    %472 = vrot.lane.b32.xlu0 %v467, 32
    %v473 = vpop.permute.xlu0 %472
    %v476 = vadd.f32 %v456, %v471
    %v477 = vadd.f32 %v457, %v473
    %v478 = vtanh.pop %v476
    %v479 = vtanh.pop %v477
    %482 = vrot.lane.b32.xlu0 %v478, 64
    %v483 = vpop.permute.xlu0 %482
    %484 = vrot.lane.b32.xlu0 %v479, 64
    %v485 = vpop.permute.xlu0 %484
    %v488 = vmul.f32 %v438, %v483
    %v489 = vmul.f32 %v453, %v485
    %s490 = smul.u32 2, 2
    %s491 = smul.addr %s490, 8
    %s492 = scalar_lea.vmem [#allocation2], %s491
    %v493 = vld [vmem:[%s492] sm:$0xff]
    %v494 = vld [vmem:[%s492 + $0x10] sm:$0xff]
    %s495 = smul.u32 12, 2
    %s496 = smul.addr %s495, 8
    %s497 = scalar_lea.vmem [#allocation2], %s496
    %v498 = vld [vmem:[%s497 + $0x8] sm:$0xff]
    %v499 = vld [vmem:[%s497 + $0x18] sm:$0xff]
    %502 = vrot.lane.b32.xlu0 %v414, 32
    %v503 = vpop.permute.xlu0 %502
    %504 = vrot.lane.b32.xlu0 %v415, 32
    %v505 = vpop.permute.xlu0 %504
    %v506 = vsel %vm60, %v503, 0
    %v508 = vsel %vm60, %v505, 0
    %510 = vmatpush.msra.mxu0 0.0
    %511 = vmatpush.msra.mxu0 0.0
    %512 = vmatpush.msra.mxu0 0.0
    %513 = vmatpush.msra.mxu0 0.0
    %514 = vmatpush.msra.mxu0 0.0
    %515 = vmatpush.msra.mxu0 0.0
    %516 = vmatpush.msra.mxu0 0.0
    %517 = vmatpush.msra.mxu0 0.0
    %518 = vmatpush.msra.mxu0 0.0
    %519 = vmatpush.msra.mxu0 0.0
    %520 = vmatpush.msra.mxu0 0.0
    %521 = vmatpush.msra.mxu0 0.0
    %522 = vmatpush.msra.mxu0 %v274
    %523 = vmatpush.msra.mxu0 %v273
    %524 = vmatpush.msra.mxu0 %v272
    %525 = vmatpush.msra.mxu0 %v271
    %526 = vmatmul.f32.gmra.mxu0 %v506
    %v527 = vpop.f32.mrf.mxu0
    %v528 = vadd.f32 0.0, %v527
    %529 = vmatmul.f32.gmra.mxu0 %v508
    %v530 = vpop.f32.mrf.mxu0
    %v531 = vadd.f32 0.0, %v530
    %532 = vdwg.mxu0
    %v533 = vadd.f32 %v493, %v528
    %v534 = vadd.f32 %v494, %v531
    %537 = vrot.lane.b32.xlu0 %v488, 32
    %v538 = vpop.permute.xlu0 %537
    %539 = vrot.lane.b32.xlu0 %v489, 32
    %v540 = vpop.permute.xlu0 %539
    %v541 = vsel %vm60, %v538, 0
    %v543 = vsel %vm60, %v540, 0
    %545 = vmatpush.msra.mxu0 0.0
    %546 = vmatpush.msra.mxu0 0.0
    %547 = vmatpush.msra.mxu0 0.0
    %548 = vmatpush.msra.mxu0 0.0
    %549 = vmatpush.msra.mxu0 0.0
    %550 = vmatpush.msra.mxu0 0.0
    %551 = vmatpush.msra.mxu0 0.0
    %552 = vmatpush.msra.mxu0 0.0
    %553 = vmatpush.msra.mxu0 0.0
    %554 = vmatpush.msra.mxu0 0.0
    %555 = vmatpush.msra.mxu0 0.0
    %556 = vmatpush.msra.mxu0 0.0
    %557 = vmatpush.msra.mxu0 %v278
    %558 = vmatpush.msra.mxu0 %v277
    %559 = vmatpush.msra.mxu0 %v276
    %560 = vmatpush.msra.mxu0 %v275
    %561 = vmatmul.f32.gmra.mxu0 %v541
    %v562 = vpop.f32.mrf.mxu0
    %v563 = vadd.f32 0.0, %v562
    %564 = vmatmul.f32.gmra.mxu0 %v543
    %v565 = vpop.f32.mrf.mxu0
    %v566 = vadd.f32 0.0, %v565
    %567 = vdwg.mxu0
    %v568 = vadd.f32 %v498, %v563
    %v569 = vadd.f32 %v499, %v566
    %v570 = vxor.u32 %v533, 2147483648
    %v571 = vxor.u32 %v534, 2147483648
    %v572 = vmul.f32 %v570, 1.442695
    %v573 = vpow.pop %v572
    %v574 = vmul.f32 %v571, 1.442695
    %v575 = vpow.pop %v574
    %v576 = vadd.f32 %v573, 1.0
    %v577 = vadd.f32 %v575, 1.0
    %v578 = vrcp.pop %v576
    %v579 = vmul.f32 %v576, %v578
    %v580 = vsub.f32 1.0, %v579
    %v581 = vmul.f32 %v578, %v580
    %v582 = vadd.f32 %v578, %v581
    %vm583 = vweird.f32 %v576
    %vm584 = vweird.f32 %v578
    %vm585 = vmor %vm583, %vm584
    %v586 = vsel %vm585, %v578, %v582
    %v587 = vand.u32 2147483647, %v576
    %vm588 = vcmp.eq.f32.partialorder %v587, 8.507059e+37
    %v589 = vand.u32 %v576, 2147483648
    %v590 = vor.u32 1.1754944e-38, %v589
    %v591 = vsel %vm588, %v590, %v586
    %v592 = vmul.f32 1.0, %v591
    %v593 = vrcp.pop %v577
    %v594 = vmul.f32 %v577, %v593
    %v595 = vsub.f32 1.0, %v594
    %v596 = vmul.f32 %v593, %v595
    %v597 = vadd.f32 %v593, %v596
    %vm598 = vweird.f32 %v577
    %vm599 = vweird.f32 %v593
    %vm600 = vmor %vm598, %vm599
    %v601 = vsel %vm600, %v593, %v597
    %v602 = vand.u32 2147483647, %v577
    %vm603 = vcmp.eq.f32.partialorder %v602, 8.507059e+37
    %v604 = vand.u32 %v577, 2147483648
    %v605 = vor.u32 1.1754944e-38, %v604
    %v606 = vsel %vm603, %v605, %v601
    %v607 = vmul.f32 1.0, %v606
    %v608 = vtanh.pop %v533
    %v609 = vtanh.pop %v534
    %v610 = vmul.f32 %v592, %v402
    %v611 = vmul.f32 %v607, %v403
    %614 = vrot.lane.b32.xlu0 %v608, 64
    %v615 = vpop.permute.xlu0 %614
    %616 = vrot.lane.b32.xlu0 %v609, 64
    %v617 = vpop.permute.xlu0 %616
    %v620 = vmul.f32 %v592, %v615
    %v621 = vmul.f32 %v607, %v617
    %624 = vrot.lane.b32.xlu0 %v620, 32
    %v625 = vpop.permute.xlu0 %624
    %626 = vrot.lane.b32.xlu0 %v621, 32
    %v627 = vpop.permute.xlu0 %626
    %v630 = vadd.f32 %v610, %v625
    %v631 = vadd.f32 %v611, %v627
    %v632 = vtanh.pop %v630
    %v633 = vtanh.pop %v631
    %636 = vrot.lane.b32.xlu0 %v632, 64
    %v637 = vpop.permute.xlu0 %636
    %638 = vrot.lane.b32.xlu0 %v633, 64
    %v639 = vpop.permute.xlu0 %638
    %v642 = vmul.f32 %v592, %v637
    %v643 = vmul.f32 %v607, %v639
    %v644 = vxor.u32 %v568, 2147483648
    %v645 = vxor.u32 %v569, 2147483648
    %v646 = vmul.f32 %v644, 1.442695
    %v647 = vpow.pop %v646
    %v648 = vmul.f32 %v645, 1.442695
    %v649 = vpow.pop %v648
    %v650 = vadd.f32 %v647, 1.0
    %v651 = vadd.f32 %v649, 1.0
    %v652 = vrcp.pop %v650
    %v653 = vmul.f32 %v650, %v652
    %v654 = vsub.f32 1.0, %v653
    %v655 = vmul.f32 %v652, %v654
    %v656 = vadd.f32 %v652, %v655
    %vm657 = vweird.f32 %v650
    %vm658 = vweird.f32 %v652
    %vm659 = vmor %vm657, %vm658
    %v660 = vsel %vm659, %v652, %v656
    %v661 = vand.u32 2147483647, %v650
    %vm662 = vcmp.eq.f32.partialorder %v661, 8.507059e+37
    %v663 = vand.u32 %v650, 2147483648
    %v664 = vor.u32 1.1754944e-38, %v663
    %v665 = vsel %vm662, %v664, %v660
    %v666 = vmul.f32 1.0, %v665
    %v667 = vrcp.pop %v651
    %v668 = vmul.f32 %v651, %v667
    %v669 = vsub.f32 1.0, %v668
    %v670 = vmul.f32 %v667, %v669
    %v671 = vadd.f32 %v667, %v670
    %vm672 = vweird.f32 %v651
    %vm673 = vweird.f32 %v667
    %vm674 = vmor %vm672, %vm673
    %v675 = vsel %vm674, %v667, %v671
    %v676 = vand.u32 2147483647, %v651
    %vm677 = vcmp.eq.f32.partialorder %v676, 8.507059e+37
    %v678 = vand.u32 %v651, 2147483648
    %v679 = vor.u32 1.1754944e-38, %v678
    %v680 = vsel %vm677, %v679, %v675
    %v681 = vmul.f32 1.0, %v680
    %v682 = vtanh.pop %v568
    %v683 = vtanh.pop %v569
    %v684 = vmul.f32 %v666, %v476
    %v685 = vmul.f32 %v681, %v477
    %688 = vrot.lane.b32.xlu0 %v682, 64
    %v689 = vpop.permute.xlu0 %688
    %690 = vrot.lane.b32.xlu0 %v683, 64
    %v691 = vpop.permute.xlu0 %690
    %v694 = vmul.f32 %v666, %v689
    %v695 = vmul.f32 %v681, %v691
    %698 = vrot.lane.b32.xlu0 %v694, 32
    %v699 = vpop.permute.xlu0 %698
    %700 = vrot.lane.b32.xlu0 %v695, 32
    %v701 = vpop.permute.xlu0 %700
    %v704 = vadd.f32 %v684, %v699
    %v705 = vadd.f32 %v685, %v701
    %v706 = vtanh.pop %v704
    %v707 = vtanh.pop %v705
    %710 = vrot.lane.b32.xlu0 %v706, 64
    %v711 = vpop.permute.xlu0 %710
    %712 = vrot.lane.b32.xlu0 %v707, 64
    %v713 = vpop.permute.xlu0 %712
    %v716 = vmul.f32 %v666, %v711
    %v717 = vmul.f32 %v681, %v713
    %s718 = smul.u32 4, 2
    %s719 = smul.addr %s718, 8
    %s720 = scalar_lea.vmem [#allocation2], %s719
    %v721 = vld [vmem:[%s720] sm:$0xff]
    %v722 = vld [vmem:[%s720 + $0x10] sm:$0xff]
    %s723 = smul.u32 10, 2
    %s724 = smul.addr %s723, 8
    %s725 = scalar_lea.vmem [#allocation2], %s724
    %v726 = vld [vmem:[%s725 + $0x8] sm:$0xff]
    %v727 = vld [vmem:[%s725 + $0x18] sm:$0xff]
    %730 = vrot.lane.b32.xlu0 %v642, 32
    %v731 = vpop.permute.xlu0 %730
    %732 = vrot.lane.b32.xlu0 %v643, 32
    %v733 = vpop.permute.xlu0 %732
    %v734 = vsel %vm60, %v731, 0
    %v736 = vsel %vm60, %v733, 0
    %738 = vmatpush.msra.mxu0 0.0
    %739 = vmatpush.msra.mxu0 0.0
    %740 = vmatpush.msra.mxu0 0.0
    %741 = vmatpush.msra.mxu0 0.0
    %742 = vmatpush.msra.mxu0 0.0
    %743 = vmatpush.msra.mxu0 0.0
    %744 = vmatpush.msra.mxu0 0.0
    %745 = vmatpush.msra.mxu0 0.0
    %746 = vmatpush.msra.mxu0 0.0
    %747 = vmatpush.msra.mxu0 0.0
    %748 = vmatpush.msra.mxu0 0.0
    %749 = vmatpush.msra.mxu0 0.0
    %750 = vmatpush.msra.mxu0 %v274
    %751 = vmatpush.msra.mxu0 %v273
    %752 = vmatpush.msra.mxu0 %v272
    %753 = vmatpush.msra.mxu0 %v271
    %754 = vmatmul.f32.gmra.mxu0 %v734
    %v755 = vpop.f32.mrf.mxu0
    %v756 = vadd.f32 0.0, %v755
    %757 = vmatmul.f32.gmra.mxu0 %v736
    %v758 = vpop.f32.mrf.mxu0
    %v759 = vadd.f32 0.0, %v758
    %760 = vdwg.mxu0
    %v761 = vadd.f32 %v721, %v756
    %v762 = vadd.f32 %v722, %v759
    %765 = vrot.lane.b32.xlu0 %v716, 32
    %v766 = vpop.permute.xlu0 %765
    %767 = vrot.lane.b32.xlu0 %v717, 32
    %v768 = vpop.permute.xlu0 %767
    %v769 = vsel %vm60, %v766, 0
    %v771 = vsel %vm60, %v768, 0
    %773 = vmatpush.msra.mxu0 0.0
    %774 = vmatpush.msra.mxu0 0.0
    %775 = vmatpush.msra.mxu0 0.0
    %776 = vmatpush.msra.mxu0 0.0
    %777 = vmatpush.msra.mxu0 0.0
    %778 = vmatpush.msra.mxu0 0.0
    %779 = vmatpush.msra.mxu0 0.0
    %780 = vmatpush.msra.mxu0 0.0
    %781 = vmatpush.msra.mxu0 0.0
    %782 = vmatpush.msra.mxu0 0.0
    %783 = vmatpush.msra.mxu0 0.0
    %784 = vmatpush.msra.mxu0 0.0
    %785 = vmatpush.msra.mxu0 %v278
    %786 = vmatpush.msra.mxu0 %v277
    %787 = vmatpush.msra.mxu0 %v276
    %788 = vmatpush.msra.mxu0 %v275
    %789 = vmatmul.f32.gmra.mxu0 %v769
    %v790 = vpop.f32.mrf.mxu0
    %v791 = vadd.f32 0.0, %v790
    %792 = vmatmul.f32.gmra.mxu0 %v771
    %v793 = vpop.f32.mrf.mxu0
    %v794 = vadd.f32 0.0, %v793
    %795 = vdwg.mxu0
    %v796 = vadd.f32 %v726, %v791
    %v797 = vadd.f32 %v727, %v794
    %v798 = vxor.u32 %v761, 2147483648
    %v799 = vxor.u32 %v762, 2147483648
    %v800 = vmul.f32 %v798, 1.442695
    %v801 = vpow.pop %v800
    %v802 = vmul.f32 %v799, 1.442695
    %v803 = vpow.pop %v802
    %v804 = vadd.f32 %v801, 1.0
    %v805 = vadd.f32 %v803, 1.0
    %v806 = vrcp.pop %v804
    %v807 = vmul.f32 %v804, %v806
    %v808 = vsub.f32 1.0, %v807
    %v809 = vmul.f32 %v806, %v808
    %v810 = vadd.f32 %v806, %v809
    %vm811 = vweird.f32 %v804
    %vm812 = vweird.f32 %v806
    %vm813 = vmor %vm811, %vm812
    %v814 = vsel %vm813, %v806, %v810
    %v815 = vand.u32 2147483647, %v804
    %vm816 = vcmp.eq.f32.partialorder %v815, 8.507059e+37
    %v817 = vand.u32 %v804, 2147483648
    %v818 = vor.u32 1.1754944e-38, %v817
    %v819 = vsel %vm816, %v818, %v814
    %v820 = vmul.f32 1.0, %v819
    %v821 = vrcp.pop %v805
    %v822 = vmul.f32 %v805, %v821
    %v823 = vsub.f32 1.0, %v822
    %v824 = vmul.f32 %v821, %v823
    %v825 = vadd.f32 %v821, %v824
    %vm826 = vweird.f32 %v805
    %vm827 = vweird.f32 %v821
    %vm828 = vmor %vm826, %vm827
    %v829 = vsel %vm828, %v821, %v825
    %v830 = vand.u32 2147483647, %v805
    %vm831 = vcmp.eq.f32.partialorder %v830, 8.507059e+37
    %v832 = vand.u32 %v805, 2147483648
    %v833 = vor.u32 1.1754944e-38, %v832
    %v834 = vsel %vm831, %v833, %v829
    %v835 = vmul.f32 1.0, %v834
    %v836 = vtanh.pop %v761
    %v837 = vtanh.pop %v762
    %v838 = vmul.f32 %v820, %v630
    %v839 = vmul.f32 %v835, %v631
    %842 = vrot.lane.b32.xlu0 %v836, 64
    %v843 = vpop.permute.xlu0 %842
    %844 = vrot.lane.b32.xlu0 %v837, 64
    %v845 = vpop.permute.xlu0 %844
    %v848 = vmul.f32 %v820, %v843
    %v849 = vmul.f32 %v835, %v845
    %852 = vrot.lane.b32.xlu0 %v848, 32
    %v853 = vpop.permute.xlu0 %852
    %854 = vrot.lane.b32.xlu0 %v849, 32
    %v855 = vpop.permute.xlu0 %854
    %v858 = vadd.f32 %v838, %v853
    %v859 = vadd.f32 %v839, %v855
    %v860 = vtanh.pop %v858
    %v861 = vtanh.pop %v859
    %864 = vrot.lane.b32.xlu0 %v860, 64
    %v865 = vpop.permute.xlu0 %864
    %866 = vrot.lane.b32.xlu0 %v861, 64
    %v867 = vpop.permute.xlu0 %866
    %v870 = vmul.f32 %v820, %v865
    %v871 = vmul.f32 %v835, %v867
    %v872 = vxor.u32 %v796, 2147483648
    %v873 = vxor.u32 %v797, 2147483648
    %v874 = vmul.f32 %v872, 1.442695
    %v875 = vpow.pop %v874
    %v876 = vmul.f32 %v873, 1.442695
    %v877 = vpow.pop %v876
    %v878 = vadd.f32 %v875, 1.0
    %v879 = vadd.f32 %v877, 1.0
    %v880 = vrcp.pop %v878
    %v881 = vmul.f32 %v878, %v880
    %v882 = vsub.f32 1.0, %v881
    %v883 = vmul.f32 %v880, %v882
    %v884 = vadd.f32 %v880, %v883
    %vm885 = vweird.f32 %v878
    %vm886 = vweird.f32 %v880
    %vm887 = vmor %vm885, %vm886
    %v888 = vsel %vm887, %v880, %v884
    %v889 = vand.u32 2147483647, %v878
    %vm890 = vcmp.eq.f32.partialorder %v889, 8.507059e+37
    %v891 = vand.u32 %v878, 2147483648
    %v892 = vor.u32 1.1754944e-38, %v891
    %v893 = vsel %vm890, %v892, %v888
    %v894 = vmul.f32 1.0, %v893
    %v895 = vrcp.pop %v879
    %v896 = vmul.f32 %v879, %v895
    %v897 = vsub.f32 1.0, %v896
    %v898 = vmul.f32 %v895, %v897
    %v899 = vadd.f32 %v895, %v898
    %vm900 = vweird.f32 %v879
    %vm901 = vweird.f32 %v895
    %vm902 = vmor %vm900, %vm901
    %v903 = vsel %vm902, %v895, %v899
    %v904 = vand.u32 2147483647, %v879
    %vm905 = vcmp.eq.f32.partialorder %v904, 8.507059e+37
    %v906 = vand.u32 %v879, 2147483648
    %v907 = vor.u32 1.1754944e-38, %v906
    %v908 = vsel %vm905, %v907, %v903
    %v909 = vmul.f32 1.0, %v908
    %v910 = vtanh.pop %v796
    %v911 = vtanh.pop %v797
    %v912 = vmul.f32 %v894, %v704
    %v913 = vmul.f32 %v909, %v705
    %916 = vrot.lane.b32.xlu0 %v910, 64
    %v917 = vpop.permute.xlu0 %916
    %918 = vrot.lane.b32.xlu0 %v911, 64
    %v919 = vpop.permute.xlu0 %918
    %v922 = vmul.f32 %v894, %v917
    %v923 = vmul.f32 %v909, %v919
    %926 = vrot.lane.b32.xlu0 %v922, 32
    %v927 = vpop.permute.xlu0 %926
    %928 = vrot.lane.b32.xlu0 %v923, 32
    %v929 = vpop.permute.xlu0 %928
    %v932 = vadd.f32 %v912, %v927
    %v933 = vadd.f32 %v913, %v929
    %v934 = vtanh.pop %v932
    %v935 = vtanh.pop %v933
    %938 = vrot.lane.b32.xlu0 %v934, 64
    %v939 = vpop.permute.xlu0 %938
    %940 = vrot.lane.b32.xlu0 %v935, 64
    %v941 = vpop.permute.xlu0 %940
    %v944 = vmul.f32 %v894, %v939
    %v945 = vmul.f32 %v909, %v941
    %s946 = smul.u32 6, 2
    %s947 = smul.addr %s946, 8
    %s948 = scalar_lea.vmem [#allocation2], %s947
    %v949 = vld [vmem:[%s948] sm:$0xff]
    %v950 = vld [vmem:[%s948 + $0x10] sm:$0xff]
    %s951 = smul.u32 8, 2
    %s952 = smul.addr %s951, 8
    %s953 = scalar_lea.vmem [#allocation2], %s952
    %v954 = vld [vmem:[%s953 + $0x8] sm:$0xff]
    %v955 = vld [vmem:[%s953 + $0x18] sm:$0xff]
    %958 = vrot.lane.b32.xlu0 %v870, 32
    %v959 = vpop.permute.xlu0 %958
    %960 = vrot.lane.b32.xlu0 %v871, 32
    %v961 = vpop.permute.xlu0 %960
    %v962 = vsel %vm60, %v959, 0
    %v964 = vsel %vm60, %v961, 0
    %966 = vmatpush.msra.mxu0 0.0
    %967 = vmatpush.msra.mxu0 0.0
    %968 = vmatpush.msra.mxu0 0.0
    %969 = vmatpush.msra.mxu0 0.0
    %970 = vmatpush.msra.mxu0 0.0
    %971 = vmatpush.msra.mxu0 0.0
    %972 = vmatpush.msra.mxu0 0.0
    %973 = vmatpush.msra.mxu0 0.0
    %974 = vmatpush.msra.mxu0 0.0
    %975 = vmatpush.msra.mxu0 0.0
    %976 = vmatpush.msra.mxu0 0.0
    %977 = vmatpush.msra.mxu0 0.0
    %978 = vmatpush.msra.mxu0 %v274
    %979 = vmatpush.msra.mxu0 %v273
    %980 = vmatpush.msra.mxu0 %v272
    %981 = vmatpush.msra.mxu0 %v271
    %982 = vmatmul.f32.gmra.mxu0 %v962
    %v983 = vpop.f32.mrf.mxu0
    %v984 = vadd.f32 0.0, %v983
    %985 = vmatmul.f32.gmra.mxu0 %v964
    %v986 = vpop.f32.mrf.mxu0
    %v987 = vadd.f32 0.0, %v986
    %988 = vdwg.mxu0
    %v989 = vadd.f32 %v949, %v984
    %v990 = vadd.f32 %v950, %v987
    %993 = vrot.lane.b32.xlu0 %v944, 32
    %v994 = vpop.permute.xlu0 %993
    %995 = vrot.lane.b32.xlu0 %v945, 32
    %v996 = vpop.permute.xlu0 %995
    %v997 = vsel %vm60, %v994, 0
    %v999 = vsel %vm60, %v996, 0
    %1001 = vmatpush.msra.mxu0 0.0
    %1002 = vmatpush.msra.mxu0 0.0
    %1003 = vmatpush.msra.mxu0 0.0
    %1004 = vmatpush.msra.mxu0 0.0
    %1005 = vmatpush.msra.mxu0 0.0
    %1006 = vmatpush.msra.mxu0 0.0
    %1007 = vmatpush.msra.mxu0 0.0
    %1008 = vmatpush.msra.mxu0 0.0
    %1009 = vmatpush.msra.mxu0 0.0
    %1010 = vmatpush.msra.mxu0 0.0
    %1011 = vmatpush.msra.mxu0 0.0
    %1012 = vmatpush.msra.mxu0 0.0
    %1013 = vmatpush.msra.mxu0 %v278
    %1014 = vmatpush.msra.mxu0 %v277
    %1015 = vmatpush.msra.mxu0 %v276
    %1016 = vmatpush.msra.mxu0 %v275
    %1017 = vmatmul.f32.gmra.mxu0 %v997
    %v1018 = vpop.f32.mrf.mxu0
    %v1019 = vadd.f32 0.0, %v1018
    %1020 = vmatmul.f32.gmra.mxu0 %v999
    %v1021 = vpop.f32.mrf.mxu0
    %v1022 = vadd.f32 0.0, %v1021
    %1023 = vdwg.mxu0
    %v1024 = vadd.f32 %v954, %v1019
    %v1025 = vadd.f32 %v955, %v1022
    %v1026 = vxor.u32 %v989, 2147483648
    %v1027 = vxor.u32 %v990, 2147483648
    %v1028 = vmul.f32 %v1026, 1.442695
    %v1029 = vpow.pop %v1028
    %v1030 = vmul.f32 %v1027, 1.442695
    %v1031 = vpow.pop %v1030
    %v1032 = vadd.f32 %v1029, 1.0
    %v1033 = vadd.f32 %v1031, 1.0
    %v1034 = vrcp.pop %v1032
    %v1035 = vmul.f32 %v1032, %v1034
    %v1036 = vsub.f32 1.0, %v1035
    %v1037 = vmul.f32 %v1034, %v1036
    %v1038 = vadd.f32 %v1034, %v1037
    %vm1039 = vweird.f32 %v1032
    %vm1040 = vweird.f32 %v1034
    %vm1041 = vmor %vm1039, %vm1040
    %v1042 = vsel %vm1041, %v1034, %v1038
    %v1043 = vand.u32 2147483647, %v1032
    %vm1044 = vcmp.eq.f32.partialorder %v1043, 8.507059e+37
    %v1045 = vand.u32 %v1032, 2147483648
    %v1046 = vor.u32 1.1754944e-38, %v1045
    %v1047 = vsel %vm1044, %v1046, %v1042
    %v1048 = vmul.f32 1.0, %v1047
    %v1049 = vrcp.pop %v1033
    %v1050 = vmul.f32 %v1033, %v1049
    %v1051 = vsub.f32 1.0, %v1050
    %v1052 = vmul.f32 %v1049, %v1051
    %v1053 = vadd.f32 %v1049, %v1052
    %vm1054 = vweird.f32 %v1033
    %vm1055 = vweird.f32 %v1049
    %vm1056 = vmor %vm1054, %vm1055
    %v1057 = vsel %vm1056, %v1049, %v1053
    %v1058 = vand.u32 2147483647, %v1033
    %vm1059 = vcmp.eq.f32.partialorder %v1058, 8.507059e+37
    %v1060 = vand.u32 %v1033, 2147483648
    %v1061 = vor.u32 1.1754944e-38, %v1060
    %v1062 = vsel %vm1059, %v1061, %v1057
    %v1063 = vmul.f32 1.0, %v1062
    %v1064 = vtanh.pop %v989
    %v1065 = vtanh.pop %v990
    %v1066 = vmul.f32 %v1048, %v858
    %v1067 = vmul.f32 %v1063, %v859
    %1070 = vrot.lane.b32.xlu0 %v1064, 64
    %v1071 = vpop.permute.xlu0 %1070
    %1072 = vrot.lane.b32.xlu0 %v1065, 64
    %v1073 = vpop.permute.xlu0 %1072
    %v1076 = vmul.f32 %v1048, %v1071
    %v1077 = vmul.f32 %v1063, %v1073
    %1080 = vrot.lane.b32.xlu0 %v1076, 32
    %v1081 = vpop.permute.xlu0 %1080
    %1082 = vrot.lane.b32.xlu0 %v1077, 32
    %v1083 = vpop.permute.xlu0 %1082
    %v1086 = vadd.f32 %v1066, %v1081
    %v1087 = vadd.f32 %v1067, %v1083
    %v1088 = vtanh.pop %v1086
    %v1089 = vtanh.pop %v1087
    %1092 = vrot.lane.b32.xlu0 %v1088, 64
    %v1093 = vpop.permute.xlu0 %1092
    %1094 = vrot.lane.b32.xlu0 %v1089, 64
    %v1095 = vpop.permute.xlu0 %1094
    %v1098 = vmul.f32 %v1048, %v1093
    %v1099 = vmul.f32 %v1063, %v1095
    %v1100 = vxor.u32 %v1024, 2147483648
    %v1101 = vxor.u32 %v1025, 2147483648
    %v1102 = vmul.f32 %v1100, 1.442695
    %v1103 = vpow.pop %v1102
    %v1104 = vmul.f32 %v1101, 1.442695
    %v1105 = vpow.pop %v1104
    %v1106 = vadd.f32 %v1103, 1.0
    %v1107 = vadd.f32 %v1105, 1.0
    %v1108 = vrcp.pop %v1106
    %v1109 = vmul.f32 %v1106, %v1108
    %v1110 = vsub.f32 1.0, %v1109
    %v1111 = vmul.f32 %v1108, %v1110
    %v1112 = vadd.f32 %v1108, %v1111
    %vm1113 = vweird.f32 %v1106
    %vm1114 = vweird.f32 %v1108
    %vm1115 = vmor %vm1113, %vm1114
    %v1116 = vsel %vm1115, %v1108, %v1112
    %v1117 = vand.u32 2147483647, %v1106
    %vm1118 = vcmp.eq.f32.partialorder %v1117, 8.507059e+37
    %v1119 = vand.u32 %v1106, 2147483648
    %v1120 = vor.u32 1.1754944e-38, %v1119
    %v1121 = vsel %vm1118, %v1120, %v1116
    %v1122 = vmul.f32 1.0, %v1121
    %v1123 = vrcp.pop %v1107
    %v1124 = vmul.f32 %v1107, %v1123
    %v1125 = vsub.f32 1.0, %v1124
    %v1126 = vmul.f32 %v1123, %v1125
    %v1127 = vadd.f32 %v1123, %v1126
    %vm1128 = vweird.f32 %v1107
    %vm1129 = vweird.f32 %v1123
    %vm1130 = vmor %vm1128, %vm1129
    %v1131 = vsel %vm1130, %v1123, %v1127
    %v1132 = vand.u32 2147483647, %v1107
    %vm1133 = vcmp.eq.f32.partialorder %v1132, 8.507059e+37
    %v1134 = vand.u32 %v1107, 2147483648
    %v1135 = vor.u32 1.1754944e-38, %v1134
    %v1136 = vsel %vm1133, %v1135, %v1131
    %v1137 = vmul.f32 1.0, %v1136
    %v1138 = vtanh.pop %v1024
    %v1139 = vtanh.pop %v1025
    %v1140 = vmul.f32 %v1122, %v932
    %v1141 = vmul.f32 %v1137, %v933
    %1144 = vrot.lane.b32.xlu0 %v1138, 64
    %v1145 = vpop.permute.xlu0 %1144
    %1146 = vrot.lane.b32.xlu0 %v1139, 64
    %v1147 = vpop.permute.xlu0 %1146
    %v1150 = vmul.f32 %v1122, %v1145
    %v1151 = vmul.f32 %v1137, %v1147
    %1154 = vrot.lane.b32.xlu0 %v1150, 32
    %v1155 = vpop.permute.xlu0 %1154
    %1156 = vrot.lane.b32.xlu0 %v1151, 32
    %v1157 = vpop.permute.xlu0 %1156
    %v1160 = vadd.f32 %v1140, %v1155
    %v1161 = vadd.f32 %v1141, %v1157
    %v1162 = vtanh.pop %v1160
    %v1163 = vtanh.pop %v1161
    %1166 = vrot.lane.b32.xlu0 %v1162, 64
    %v1167 = vpop.permute.xlu0 %1166
    %1168 = vrot.lane.b32.xlu0 %v1163, 64
    %v1169 = vpop.permute.xlu0 %1168
    %v1172 = vmul.f32 %v1122, %v1167
    %v1173 = vmul.f32 %v1137, %v1169
    %v1174 = vld [vmem:[%s953] sm:$0xff]
    %v1175 = vld [vmem:[%s953 + $0x10] sm:$0xff]
    %v1176 = vld [vmem:[%s948 + $0x8] sm:$0xff]
    %v1177 = vld [vmem:[%s948 + $0x18] sm:$0xff]
    %1180 = vrot.lane.b32.xlu0 %v1098, 32
    %v1181 = vpop.permute.xlu0 %1180
    %1182 = vrot.lane.b32.xlu0 %v1099, 32
    %v1183 = vpop.permute.xlu0 %1182
    %v1184 = vsel %vm60, %v1181, 0
    %v1186 = vsel %vm60, %v1183, 0
    %1188 = vmatpush.msra.mxu0 0.0
    %1189 = vmatpush.msra.mxu0 0.0
    %1190 = vmatpush.msra.mxu0 0.0
    %1191 = vmatpush.msra.mxu0 0.0
    %1192 = vmatpush.msra.mxu0 0.0
    %1193 = vmatpush.msra.mxu0 0.0
    %1194 = vmatpush.msra.mxu0 0.0
    %1195 = vmatpush.msra.mxu0 0.0
    %1196 = vmatpush.msra.mxu0 0.0
    %1197 = vmatpush.msra.mxu0 0.0
    %1198 = vmatpush.msra.mxu0 0.0
    %1199 = vmatpush.msra.mxu0 0.0
    %1200 = vmatpush.msra.mxu0 %v274
    %1201 = vmatpush.msra.mxu0 %v273
    %1202 = vmatpush.msra.mxu0 %v272
    %1203 = vmatpush.msra.mxu0 %v271
    %1204 = vmatmul.f32.gmra.mxu0 %v1184
    %v1205 = vpop.f32.mrf.mxu0
    %v1206 = vadd.f32 0.0, %v1205
    %1207 = vmatmul.f32.gmra.mxu0 %v1186
    %v1208 = vpop.f32.mrf.mxu0
    %v1209 = vadd.f32 0.0, %v1208
    %1210 = vdwg.mxu0
    %v1211 = vadd.f32 %v1174, %v1206
    %v1212 = vadd.f32 %v1175, %v1209
    %1215 = vrot.lane.b32.xlu0 %v1172, 32
    %v1216 = vpop.permute.xlu0 %1215
    %1217 = vrot.lane.b32.xlu0 %v1173, 32
    %v1218 = vpop.permute.xlu0 %1217
    %v1219 = vsel %vm60, %v1216, 0
    %v1221 = vsel %vm60, %v1218, 0
    %1223 = vmatpush.msra.mxu0 0.0
    %1224 = vmatpush.msra.mxu0 0.0
    %1225 = vmatpush.msra.mxu0 0.0
    %1226 = vmatpush.msra.mxu0 0.0
    %1227 = vmatpush.msra.mxu0 0.0
    %1228 = vmatpush.msra.mxu0 0.0
    %1229 = vmatpush.msra.mxu0 0.0
    %1230 = vmatpush.msra.mxu0 0.0
    %1231 = vmatpush.msra.mxu0 0.0
    %1232 = vmatpush.msra.mxu0 0.0
    %1233 = vmatpush.msra.mxu0 0.0
    %1234 = vmatpush.msra.mxu0 0.0
    %1235 = vmatpush.msra.mxu0 %v278
    %1236 = vmatpush.msra.mxu0 %v277
    %1237 = vmatpush.msra.mxu0 %v276
    %1238 = vmatpush.msra.mxu0 %v275
    %1239 = vmatmul.f32.gmra.mxu0 %v1219
    %v1240 = vpop.f32.mrf.mxu0
    %v1241 = vadd.f32 0.0, %v1240
    %1242 = vmatmul.f32.gmra.mxu0 %v1221
    %v1243 = vpop.f32.mrf.mxu0
    %v1244 = vadd.f32 0.0, %v1243
    %1245 = vdwg.mxu0
    %v1246 = vadd.f32 %v1176, %v1241
    %v1247 = vadd.f32 %v1177, %v1244
    %v1248 = vxor.u32 %v1211, 2147483648
    %v1249 = vxor.u32 %v1212, 2147483648
    %v1250 = vmul.f32 %v1248, 1.442695
    %v1251 = vpow.pop %v1250
    %v1252 = vmul.f32 %v1249, 1.442695
    %v1253 = vpow.pop %v1252
    %v1254 = vadd.f32 %v1251, 1.0
    %v1255 = vadd.f32 %v1253, 1.0
    %v1256 = vrcp.pop %v1254
    %v1257 = vmul.f32 %v1254, %v1256
    %v1258 = vsub.f32 1.0, %v1257
    %v1259 = vmul.f32 %v1256, %v1258
    %v1260 = vadd.f32 %v1256, %v1259
    %vm1261 = vweird.f32 %v1254
    %vm1262 = vweird.f32 %v1256
    %vm1263 = vmor %vm1261, %vm1262
    %v1264 = vsel %vm1263, %v1256, %v1260
    %v1265 = vand.u32 2147483647, %v1254
    %vm1266 = vcmp.eq.f32.partialorder %v1265, 8.507059e+37
    %v1267 = vand.u32 %v1254, 2147483648
    %v1268 = vor.u32 1.1754944e-38, %v1267
    %v1269 = vsel %vm1266, %v1268, %v1264
    %v1270 = vmul.f32 1.0, %v1269
    %v1271 = vrcp.pop %v1255
    %v1272 = vmul.f32 %v1255, %v1271
    %v1273 = vsub.f32 1.0, %v1272
    %v1274 = vmul.f32 %v1271, %v1273
    %v1275 = vadd.f32 %v1271, %v1274
    %vm1276 = vweird.f32 %v1255
    %vm1277 = vweird.f32 %v1271
    %vm1278 = vmor %vm1276, %vm1277
    %v1279 = vsel %vm1278, %v1271, %v1275
    %v1280 = vand.u32 2147483647, %v1255
    %vm1281 = vcmp.eq.f32.partialorder %v1280, 8.507059e+37
    %v1282 = vand.u32 %v1255, 2147483648
    %v1283 = vor.u32 1.1754944e-38, %v1282
    %v1284 = vsel %vm1281, %v1283, %v1279
    %v1285 = vmul.f32 1.0, %v1284
    %v1286 = vtanh.pop %v1211
    %v1287 = vtanh.pop %v1212
    %v1288 = vmul.f32 %v1270, %v1086
    %v1289 = vmul.f32 %v1285, %v1087
    %1292 = vrot.lane.b32.xlu0 %v1286, 64
    %v1293 = vpop.permute.xlu0 %1292
    %1294 = vrot.lane.b32.xlu0 %v1287, 64
    %v1295 = vpop.permute.xlu0 %1294
    %v1298 = vmul.f32 %v1270, %v1293
    %v1299 = vmul.f32 %v1285, %v1295
    %1302 = vrot.lane.b32.xlu0 %v1298, 32
    %v1303 = vpop.permute.xlu0 %1302
    %1304 = vrot.lane.b32.xlu0 %v1299, 32
    %v1305 = vpop.permute.xlu0 %1304
    %v1308 = vadd.f32 %v1288, %v1303
    %v1309 = vadd.f32 %v1289, %v1305
    %v1310 = vtanh.pop %v1308
    %v1311 = vtanh.pop %v1309
    %1314 = vrot.lane.b32.xlu0 %v1310, 64
    %v1315 = vpop.permute.xlu0 %1314
    %1316 = vrot.lane.b32.xlu0 %v1311, 64
    %v1317 = vpop.permute.xlu0 %1316
    %v1320 = vmul.f32 %v1270, %v1315
    %v1321 = vmul.f32 %v1285, %v1317
    %v1322 = vxor.u32 %v1246, 2147483648
    %v1323 = vxor.u32 %v1247, 2147483648
    %v1324 = vmul.f32 %v1322, 1.442695
    %v1325 = vpow.pop %v1324
    %v1326 = vmul.f32 %v1323, 1.442695
    %v1327 = vpow.pop %v1326
    %v1328 = vadd.f32 %v1325, 1.0
    %v1329 = vadd.f32 %v1327, 1.0
    %v1330 = vrcp.pop %v1328
    %v1331 = vmul.f32 %v1328, %v1330
    %v1332 = vsub.f32 1.0, %v1331
    %v1333 = vmul.f32 %v1330, %v1332
    %v1334 = vadd.f32 %v1330, %v1333
    %vm1335 = vweird.f32 %v1328
    %vm1336 = vweird.f32 %v1330
    %vm1337 = vmor %vm1335, %vm1336
    %v1338 = vsel %vm1337, %v1330, %v1334
    %v1339 = vand.u32 2147483647, %v1328
    %vm1340 = vcmp.eq.f32.partialorder %v1339, 8.507059e+37
    %v1341 = vand.u32 %v1328, 2147483648
    %v1342 = vor.u32 1.1754944e-38, %v1341
    %v1343 = vsel %vm1340, %v1342, %v1338
    %v1344 = vmul.f32 1.0, %v1343
    %v1345 = vrcp.pop %v1329
    %v1346 = vmul.f32 %v1329, %v1345
    %v1347 = vsub.f32 1.0, %v1346
    %v1348 = vmul.f32 %v1345, %v1347
    %v1349 = vadd.f32 %v1345, %v1348
    %vm1350 = vweird.f32 %v1329
    %vm1351 = vweird.f32 %v1345
    %vm1352 = vmor %vm1350, %vm1351
    %v1353 = vsel %vm1352, %v1345, %v1349
    %v1354 = vand.u32 2147483647, %v1329
    %vm1355 = vcmp.eq.f32.partialorder %v1354, 8.507059e+37
    %v1356 = vand.u32 %v1329, 2147483648
    %v1357 = vor.u32 1.1754944e-38, %v1356
    %v1358 = vsel %vm1355, %v1357, %v1353
    %v1359 = vmul.f32 1.0, %v1358
    %v1360 = vtanh.pop %v1246
    %v1361 = vtanh.pop %v1247
    %v1362 = vmul.f32 %v1344, %v1160
    %v1363 = vmul.f32 %v1359, %v1161
    %1366 = vrot.lane.b32.xlu0 %v1360, 64
    %v1367 = vpop.permute.xlu0 %1366
    %1368 = vrot.lane.b32.xlu0 %v1361, 64
    %v1369 = vpop.permute.xlu0 %1368
    %v1372 = vmul.f32 %v1344, %v1367
    %v1373 = vmul.f32 %v1359, %v1369
    %1376 = vrot.lane.b32.xlu0 %v1372, 32
    %v1377 = vpop.permute.xlu0 %1376
    %1378 = vrot.lane.b32.xlu0 %v1373, 32
    %v1379 = vpop.permute.xlu0 %1378
    %v1382 = vadd.f32 %v1362, %v1377
    %v1383 = vadd.f32 %v1363, %v1379
    %v1384 = vtanh.pop %v1382
    %v1385 = vtanh.pop %v1383
    %1388 = vrot.lane.b32.xlu0 %v1384, 64
    %v1389 = vpop.permute.xlu0 %1388
    %1390 = vrot.lane.b32.xlu0 %v1385, 64
    %v1391 = vpop.permute.xlu0 %1390
    %v1394 = vmul.f32 %v1344, %v1389
    %v1395 = vmul.f32 %v1359, %v1391
    %v1396 = vld [vmem:[%s725] sm:$0xff]
    %v1397 = vld [vmem:[%s725 + $0x10] sm:$0xff]
    %v1398 = vld [vmem:[%s720 + $0x8] sm:$0xff]
    %v1399 = vld [vmem:[%s720 + $0x18] sm:$0xff]
    %1402 = vrot.lane.b32.xlu0 %v1320, 32
    %v1403 = vpop.permute.xlu0 %1402
    %1404 = vrot.lane.b32.xlu0 %v1321, 32
    %v1405 = vpop.permute.xlu0 %1404
    %v1406 = vsel %vm60, %v1403, 0
    %v1408 = vsel %vm60, %v1405, 0
    %1410 = vmatpush.msra.mxu0 0.0
    %1411 = vmatpush.msra.mxu0 0.0
    %1412 = vmatpush.msra.mxu0 0.0
    %1413 = vmatpush.msra.mxu0 0.0
    %1414 = vmatpush.msra.mxu0 0.0
    %1415 = vmatpush.msra.mxu0 0.0
    %1416 = vmatpush.msra.mxu0 0.0
    %1417 = vmatpush.msra.mxu0 0.0
    %1418 = vmatpush.msra.mxu0 0.0
    %1419 = vmatpush.msra.mxu0 0.0
    %1420 = vmatpush.msra.mxu0 0.0
    %1421 = vmatpush.msra.mxu0 0.0
    %1422 = vmatpush.msra.mxu0 %v274
    %1423 = vmatpush.msra.mxu0 %v273
    %1424 = vmatpush.msra.mxu0 %v272
    %1425 = vmatpush.msra.mxu0 %v271
    %1426 = vmatmul.f32.gmra.mxu0 %v1406
    %v1427 = vpop.f32.mrf.mxu0
    %v1428 = vadd.f32 0.0, %v1427
    %1429 = vmatmul.f32.gmra.mxu0 %v1408
    %v1430 = vpop.f32.mrf.mxu0
    %v1431 = vadd.f32 0.0, %v1430
    %1432 = vdwg.mxu0
    %v1433 = vadd.f32 %v1396, %v1428
    %v1434 = vadd.f32 %v1397, %v1431
    %1437 = vrot.lane.b32.xlu0 %v1394, 32
    %v1438 = vpop.permute.xlu0 %1437
    %1439 = vrot.lane.b32.xlu0 %v1395, 32
    %v1440 = vpop.permute.xlu0 %1439
    %v1441 = vsel %vm60, %v1438, 0
    %v1443 = vsel %vm60, %v1440, 0
    %1445 = vmatpush.msra.mxu0 0.0
    %1446 = vmatpush.msra.mxu0 0.0
    %1447 = vmatpush.msra.mxu0 0.0
    %1448 = vmatpush.msra.mxu0 0.0
    %1449 = vmatpush.msra.mxu0 0.0
    %1450 = vmatpush.msra.mxu0 0.0
    %1451 = vmatpush.msra.mxu0 0.0
    %1452 = vmatpush.msra.mxu0 0.0
    %1453 = vmatpush.msra.mxu0 0.0
    %1454 = vmatpush.msra.mxu0 0.0
    %1455 = vmatpush.msra.mxu0 0.0
    %1456 = vmatpush.msra.mxu0 0.0
    %1457 = vmatpush.msra.mxu0 %v278
    %1458 = vmatpush.msra.mxu0 %v277
    %1459 = vmatpush.msra.mxu0 %v276
    %1460 = vmatpush.msra.mxu0 %v275
    %1461 = vmatmul.f32.gmra.mxu0 %v1441
    %v1462 = vpop.f32.mrf.mxu0
    %v1463 = vadd.f32 0.0, %v1462
    %1464 = vmatmul.f32.gmra.mxu0 %v1443
    %v1465 = vpop.f32.mrf.mxu0
    %v1466 = vadd.f32 0.0, %v1465
    %1467 = vdwg.mxu0
    %v1468 = vadd.f32 %v1398, %v1463
    %v1469 = vadd.f32 %v1399, %v1466
    %v1470 = vxor.u32 %v1433, 2147483648
    %v1471 = vxor.u32 %v1434, 2147483648
    %v1472 = vmul.f32 %v1470, 1.442695
    %v1473 = vpow.pop %v1472
    %v1474 = vmul.f32 %v1471, 1.442695
    %v1475 = vpow.pop %v1474
    %v1476 = vadd.f32 %v1473, 1.0
    %v1477 = vadd.f32 %v1475, 1.0
    %v1478 = vrcp.pop %v1476
    %v1479 = vmul.f32 %v1476, %v1478
    %v1480 = vsub.f32 1.0, %v1479
    %v1481 = vmul.f32 %v1478, %v1480
    %v1482 = vadd.f32 %v1478, %v1481
    %vm1483 = vweird.f32 %v1476
    %vm1484 = vweird.f32 %v1478
    %vm1485 = vmor %vm1483, %vm1484
    %v1486 = vsel %vm1485, %v1478, %v1482
    %v1487 = vand.u32 2147483647, %v1476
    %vm1488 = vcmp.eq.f32.partialorder %v1487, 8.507059e+37
    %v1489 = vand.u32 %v1476, 2147483648
    %v1490 = vor.u32 1.1754944e-38, %v1489
    %v1491 = vsel %vm1488, %v1490, %v1486
    %v1492 = vmul.f32 1.0, %v1491
    %v1493 = vrcp.pop %v1477
    %v1494 = vmul.f32 %v1477, %v1493
    %v1495 = vsub.f32 1.0, %v1494
    %v1496 = vmul.f32 %v1493, %v1495
    %v1497 = vadd.f32 %v1493, %v1496
    %vm1498 = vweird.f32 %v1477
    %vm1499 = vweird.f32 %v1493
    %vm1500 = vmor %vm1498, %vm1499
    %v1501 = vsel %vm1500, %v1493, %v1497
    %v1502 = vand.u32 2147483647, %v1477
    %vm1503 = vcmp.eq.f32.partialorder %v1502, 8.507059e+37
    %v1504 = vand.u32 %v1477, 2147483648
    %v1505 = vor.u32 1.1754944e-38, %v1504
    %v1506 = vsel %vm1503, %v1505, %v1501
    %v1507 = vmul.f32 1.0, %v1506
    %v1508 = vtanh.pop %v1433
    %v1509 = vtanh.pop %v1434
    %v1510 = vmul.f32 %v1492, %v1308
    %v1511 = vmul.f32 %v1507, %v1309
    %1514 = vrot.lane.b32.xlu0 %v1508, 64
    %v1515 = vpop.permute.xlu0 %1514
    %1516 = vrot.lane.b32.xlu0 %v1509, 64
    %v1517 = vpop.permute.xlu0 %1516
    %v1520 = vmul.f32 %v1492, %v1515
    %v1521 = vmul.f32 %v1507, %v1517
    %1524 = vrot.lane.b32.xlu0 %v1520, 32
    %v1525 = vpop.permute.xlu0 %1524
    %1526 = vrot.lane.b32.xlu0 %v1521, 32
    %v1527 = vpop.permute.xlu0 %1526
    %v1530 = vadd.f32 %v1510, %v1525
    %v1531 = vadd.f32 %v1511, %v1527
    %v1532 = vtanh.pop %v1530
    %v1533 = vtanh.pop %v1531
    %1536 = vrot.lane.b32.xlu0 %v1532, 64
    %v1537 = vpop.permute.xlu0 %1536
    %1538 = vrot.lane.b32.xlu0 %v1533, 64
    %v1539 = vpop.permute.xlu0 %1538
    %v1542 = vmul.f32 %v1492, %v1537
    %v1543 = vmul.f32 %v1507, %v1539
    %v1544 = vxor.u32 %v1468, 2147483648
    %v1545 = vxor.u32 %v1469, 2147483648
    %v1546 = vmul.f32 %v1544, 1.442695
    %v1547 = vpow.pop %v1546
    %v1548 = vmul.f32 %v1545, 1.442695
    %v1549 = vpow.pop %v1548
    %v1550 = vadd.f32 %v1547, 1.0
    %v1551 = vadd.f32 %v1549, 1.0
    %v1552 = vrcp.pop %v1550
    %v1553 = vmul.f32 %v1550, %v1552
    %v1554 = vsub.f32 1.0, %v1553
    %v1555 = vmul.f32 %v1552, %v1554
    %v1556 = vadd.f32 %v1552, %v1555
    %vm1557 = vweird.f32 %v1550
    %vm1558 = vweird.f32 %v1552
    %vm1559 = vmor %vm1557, %vm1558
    %v1560 = vsel %vm1559, %v1552, %v1556
    %v1561 = vand.u32 2147483647, %v1550
    %vm1562 = vcmp.eq.f32.partialorder %v1561, 8.507059e+37
    %v1563 = vand.u32 %v1550, 2147483648
    %v1564 = vor.u32 1.1754944e-38, %v1563
    %v1565 = vsel %vm1562, %v1564, %v1560
    %v1566 = vmul.f32 1.0, %v1565
    %v1567 = vrcp.pop %v1551
    %v1568 = vmul.f32 %v1551, %v1567
    %v1569 = vsub.f32 1.0, %v1568
    %v1570 = vmul.f32 %v1567, %v1569
    %v1571 = vadd.f32 %v1567, %v1570
    %vm1572 = vweird.f32 %v1551
    %vm1573 = vweird.f32 %v1567
    %vm1574 = vmor %vm1572, %vm1573
    %v1575 = vsel %vm1574, %v1567, %v1571
    %v1576 = vand.u32 2147483647, %v1551
    %vm1577 = vcmp.eq.f32.partialorder %v1576, 8.507059e+37
    %v1578 = vand.u32 %v1551, 2147483648
    %v1579 = vor.u32 1.1754944e-38, %v1578
    %v1580 = vsel %vm1577, %v1579, %v1575
    %v1581 = vmul.f32 1.0, %v1580
    %v1582 = vtanh.pop %v1468
    %v1583 = vtanh.pop %v1469
    %v1584 = vmul.f32 %v1566, %v1382
    %v1585 = vmul.f32 %v1581, %v1383
    %1588 = vrot.lane.b32.xlu0 %v1582, 64
    %v1589 = vpop.permute.xlu0 %1588
    %1590 = vrot.lane.b32.xlu0 %v1583, 64
    %v1591 = vpop.permute.xlu0 %1590
    %v1594 = vmul.f32 %v1566, %v1589
    %v1595 = vmul.f32 %v1581, %v1591
    %1598 = vrot.lane.b32.xlu0 %v1594, 32
    %v1599 = vpop.permute.xlu0 %1598
    %1600 = vrot.lane.b32.xlu0 %v1595, 32
    %v1601 = vpop.permute.xlu0 %1600
    %v1604 = vadd.f32 %v1584, %v1599
    %v1605 = vadd.f32 %v1585, %v1601
    %v1606 = vtanh.pop %v1604
    %v1607 = vtanh.pop %v1605
    %1610 = vrot.lane.b32.xlu0 %v1606, 64
    %v1611 = vpop.permute.xlu0 %1610
    %1612 = vrot.lane.b32.xlu0 %v1607, 64
    %v1613 = vpop.permute.xlu0 %1612
    %v1616 = vmul.f32 %v1566, %v1611
    %v1617 = vmul.f32 %v1581, %v1613
    %v1618 = vld [vmem:[%s497] sm:$0xff]
    %v1619 = vld [vmem:[%s497 + $0x10] sm:$0xff]
    %v1620 = vld [vmem:[%s492 + $0x8] sm:$0xff]
    %v1621 = vld [vmem:[%s492 + $0x18] sm:$0xff]
    %1624 = vrot.lane.b32.xlu0 %v1542, 32
    %v1625 = vpop.permute.xlu0 %1624
    %1626 = vrot.lane.b32.xlu0 %v1543, 32
    %v1627 = vpop.permute.xlu0 %1626
    %v1628 = vsel %vm60, %v1625, 0
    %v1630 = vsel %vm60, %v1627, 0
    %1632 = vmatpush.msra.mxu0 0.0
    %1633 = vmatpush.msra.mxu0 0.0
    %1634 = vmatpush.msra.mxu0 0.0
    %1635 = vmatpush.msra.mxu0 0.0
    %1636 = vmatpush.msra.mxu0 0.0
    %1637 = vmatpush.msra.mxu0 0.0
    %1638 = vmatpush.msra.mxu0 0.0
    %1639 = vmatpush.msra.mxu0 0.0
    %1640 = vmatpush.msra.mxu0 0.0
    %1641 = vmatpush.msra.mxu0 0.0
    %1642 = vmatpush.msra.mxu0 0.0
    %1643 = vmatpush.msra.mxu0 0.0
    %1644 = vmatpush.msra.mxu0 %v274
    %1645 = vmatpush.msra.mxu0 %v273
    %1646 = vmatpush.msra.mxu0 %v272
    %1647 = vmatpush.msra.mxu0 %v271
    %1648 = vmatmul.f32.gmra.mxu0 %v1628
    %v1649 = vpop.f32.mrf.mxu0
    %v1650 = vadd.f32 0.0, %v1649
    %1651 = vmatmul.f32.gmra.mxu0 %v1630
    %v1652 = vpop.f32.mrf.mxu0
    %v1653 = vadd.f32 0.0, %v1652
    %1654 = vdwg.mxu0
    %v1655 = vadd.f32 %v1618, %v1650
    %v1656 = vadd.f32 %v1619, %v1653
    %1659 = vrot.lane.b32.xlu0 %v1616, 32
    %v1660 = vpop.permute.xlu0 %1659
    %1661 = vrot.lane.b32.xlu0 %v1617, 32
    %v1662 = vpop.permute.xlu0 %1661
    %v1663 = vsel %vm60, %v1660, 0
    %v1665 = vsel %vm60, %v1662, 0
    %1667 = vmatpush.msra.mxu0 0.0
    %1668 = vmatpush.msra.mxu0 0.0
    %1669 = vmatpush.msra.mxu0 0.0
    %1670 = vmatpush.msra.mxu0 0.0
    %1671 = vmatpush.msra.mxu0 0.0
    %1672 = vmatpush.msra.mxu0 0.0
    %1673 = vmatpush.msra.mxu0 0.0
    %1674 = vmatpush.msra.mxu0 0.0
    %1675 = vmatpush.msra.mxu0 0.0
    %1676 = vmatpush.msra.mxu0 0.0
    %1677 = vmatpush.msra.mxu0 0.0
    %1678 = vmatpush.msra.mxu0 0.0
    %1679 = vmatpush.msra.mxu0 %v278
    %1680 = vmatpush.msra.mxu0 %v277
    %1681 = vmatpush.msra.mxu0 %v276
    %1682 = vmatpush.msra.mxu0 %v275
    %1683 = vmatmul.f32.gmra.mxu0 %v1663
    %v1684 = vpop.f32.mrf.mxu0
    %v1685 = vadd.f32 0.0, %v1684
    %1686 = vmatmul.f32.gmra.mxu0 %v1665
    %v1687 = vpop.f32.mrf.mxu0
    %v1688 = vadd.f32 0.0, %v1687
    %1689 = vdwg.mxu0
    %v1690 = vadd.f32 %v1620, %v1685
    %v1691 = vadd.f32 %v1621, %v1688
    %v1692 = vxor.u32 %v1655, 2147483648
    %v1693 = vxor.u32 %v1656, 2147483648
    %v1694 = vmul.f32 %v1692, 1.442695
    %v1695 = vpow.pop %v1694
    %v1696 = vmul.f32 %v1693, 1.442695
    %v1697 = vpow.pop %v1696
    %v1698 = vadd.f32 %v1695, 1.0
    %v1699 = vadd.f32 %v1697, 1.0
    %v1700 = vrcp.pop %v1698
    %v1701 = vmul.f32 %v1698, %v1700
    %v1702 = vsub.f32 1.0, %v1701
    %v1703 = vmul.f32 %v1700, %v1702
    %v1704 = vadd.f32 %v1700, %v1703
    %vm1705 = vweird.f32 %v1698
    %vm1706 = vweird.f32 %v1700
    %vm1707 = vmor %vm1705, %vm1706
    %v1708 = vsel %vm1707, %v1700, %v1704
    %v1709 = vand.u32 2147483647, %v1698
    %vm1710 = vcmp.eq.f32.partialorder %v1709, 8.507059e+37
    %v1711 = vand.u32 %v1698, 2147483648
    %v1712 = vor.u32 1.1754944e-38, %v1711
    %v1713 = vsel %vm1710, %v1712, %v1708
    %v1714 = vmul.f32 1.0, %v1713
    %v1715 = vrcp.pop %v1699
    %v1716 = vmul.f32 %v1699, %v1715
    %v1717 = vsub.f32 1.0, %v1716
    %v1718 = vmul.f32 %v1715, %v1717
    %v1719 = vadd.f32 %v1715, %v1718
    %vm1720 = vweird.f32 %v1699
    %vm1721 = vweird.f32 %v1715
    %vm1722 = vmor %vm1720, %vm1721
    %v1723 = vsel %vm1722, %v1715, %v1719
    %v1724 = vand.u32 2147483647, %v1699
    %vm1725 = vcmp.eq.f32.partialorder %v1724, 8.507059e+37
    %v1726 = vand.u32 %v1699, 2147483648
    %v1727 = vor.u32 1.1754944e-38, %v1726
    %v1728 = vsel %vm1725, %v1727, %v1723
    %v1729 = vmul.f32 1.0, %v1728
    %v1730 = vtanh.pop %v1655
    %v1731 = vtanh.pop %v1656
    %v1732 = vmul.f32 %v1714, %v1530
    %v1733 = vmul.f32 %v1729, %v1531
    %1736 = vrot.lane.b32.xlu0 %v1730, 64
    %v1737 = vpop.permute.xlu0 %1736
    %1738 = vrot.lane.b32.xlu0 %v1731, 64
    %v1739 = vpop.permute.xlu0 %1738
    %v1742 = vmul.f32 %v1714, %v1737
    %v1743 = vmul.f32 %v1729, %v1739
    %1746 = vrot.lane.b32.xlu0 %v1742, 32
    %v1747 = vpop.permute.xlu0 %1746
    %1748 = vrot.lane.b32.xlu0 %v1743, 32
    %v1749 = vpop.permute.xlu0 %1748
    %v1752 = vadd.f32 %v1732, %v1747
    %v1753 = vadd.f32 %v1733, %v1749
    %v1754 = vtanh.pop %v1752
    %v1755 = vtanh.pop %v1753
    %1758 = vrot.lane.b32.xlu0 %v1754, 64
    %v1759 = vpop.permute.xlu0 %1758
    %1760 = vrot.lane.b32.xlu0 %v1755, 64
    %v1761 = vpop.permute.xlu0 %1760
    %v1764 = vmul.f32 %v1714, %v1759
    %v1765 = vmul.f32 %v1729, %v1761
    %v1766 = vxor.u32 %v1690, 2147483648
    %v1767 = vxor.u32 %v1691, 2147483648
    %v1768 = vmul.f32 %v1766, 1.442695
    %v1769 = vpow.pop %v1768
    %v1770 = vmul.f32 %v1767, 1.442695
    %v1771 = vpow.pop %v1770
    %v1772 = vadd.f32 %v1769, 1.0
    %v1773 = vadd.f32 %v1771, 1.0
    %v1774 = vrcp.pop %v1772
    %v1775 = vmul.f32 %v1772, %v1774
    %v1776 = vsub.f32 1.0, %v1775
    %v1777 = vmul.f32 %v1774, %v1776
    %v1778 = vadd.f32 %v1774, %v1777
    %vm1779 = vweird.f32 %v1772
    %vm1780 = vweird.f32 %v1774
    %vm1781 = vmor %vm1779, %vm1780
    %v1782 = vsel %vm1781, %v1774, %v1778
    %v1783 = vand.u32 2147483647, %v1772
    %vm1784 = vcmp.eq.f32.partialorder %v1783, 8.507059e+37
    %v1785 = vand.u32 %v1772, 2147483648
    %v1786 = vor.u32 1.1754944e-38, %v1785
    %v1787 = vsel %vm1784, %v1786, %v1782
    %v1788 = vmul.f32 1.0, %v1787
    %v1789 = vrcp.pop %v1773
    %v1790 = vmul.f32 %v1773, %v1789
    %v1791 = vsub.f32 1.0, %v1790
    %v1792 = vmul.f32 %v1789, %v1791
    %v1793 = vadd.f32 %v1789, %v1792
    %vm1794 = vweird.f32 %v1773
    %vm1795 = vweird.f32 %v1789
    %vm1796 = vmor %vm1794, %vm1795
    %v1797 = vsel %vm1796, %v1789, %v1793
    %v1798 = vand.u32 2147483647, %v1773
    %vm1799 = vcmp.eq.f32.partialorder %v1798, 8.507059e+37
    %v1800 = vand.u32 %v1773, 2147483648
    %v1801 = vor.u32 1.1754944e-38, %v1800
    %v1802 = vsel %vm1799, %v1801, %v1797
    %v1803 = vmul.f32 1.0, %v1802
    %v1804 = vtanh.pop %v1690
    %v1805 = vtanh.pop %v1691
    %v1806 = vmul.f32 %v1788, %v1604
    %v1807 = vmul.f32 %v1803, %v1605
    %1810 = vrot.lane.b32.xlu0 %v1804, 64
    %v1811 = vpop.permute.xlu0 %1810
    %1812 = vrot.lane.b32.xlu0 %v1805, 64
    %v1813 = vpop.permute.xlu0 %1812
    %v1816 = vmul.f32 %v1788, %v1811
    %v1817 = vmul.f32 %v1803, %v1813
    %1820 = vrot.lane.b32.xlu0 %v1816, 32
    %v1821 = vpop.permute.xlu0 %1820
    %1822 = vrot.lane.b32.xlu0 %v1817, 32
    %v1823 = vpop.permute.xlu0 %1822
    %v1826 = vadd.f32 %v1806, %v1821
    %v1827 = vadd.f32 %v1807, %v1823
    %v1828 = vtanh.pop %v1826
    %v1829 = vtanh.pop %v1827
    %1832 = vrot.lane.b32.xlu0 %v1828, 64
    %v1833 = vpop.permute.xlu0 %1832
    %1834 = vrot.lane.b32.xlu0 %v1829, 64
    %v1835 = vpop.permute.xlu0 %1834
    %v1838 = vmul.f32 %v1788, %v1833
    %v1839 = vmul.f32 %v1803, %v1835
    %v1840 = vld [vmem:[%s286] sm:$0xff]
    %v1841 = vld [vmem:[%s286 + $0x10] sm:$0xff]
    %v1842 = vld [vmem:[%s281 + $0x8] sm:$0xff]
    %v1843 = vld [vmem:[%s281 + $0x18] sm:$0xff]
    %1846 = vrot.lane.b32.xlu0 %v1764, 32
    %v1847 = vpop.permute.xlu0 %1846
    %1848 = vrot.lane.b32.xlu0 %v1765, 32
    %v1849 = vpop.permute.xlu0 %1848
    %v1850 = vsel %vm60, %v1847, 0
    %v1852 = vsel %vm60, %v1849, 0
    %1854 = vmatpush.msra.mxu0 0.0
    %1855 = vmatpush.msra.mxu0 0.0
    %1856 = vmatpush.msra.mxu0 0.0
    %1857 = vmatpush.msra.mxu0 0.0
    %1858 = vmatpush.msra.mxu0 0.0
    %1859 = vmatpush.msra.mxu0 0.0
    %1860 = vmatpush.msra.mxu0 0.0
    %1861 = vmatpush.msra.mxu0 0.0
    %1862 = vmatpush.msra.mxu0 0.0
    %1863 = vmatpush.msra.mxu0 0.0
    %1864 = vmatpush.msra.mxu0 0.0
    %1865 = vmatpush.msra.mxu0 0.0
    %1866 = vmatpush.msra.mxu0 %v274
    %1867 = vmatpush.msra.mxu0 %v273
    %1868 = vmatpush.msra.mxu0 %v272
    %1869 = vmatpush.msra.mxu0 %v271
    %1870 = vmatmul.f32.gmra.mxu0 %v1850
    %v1871 = vpop.f32.mrf.mxu0
    %v1872 = vadd.f32 0.0, %v1871
    %1873 = vmatmul.f32.gmra.mxu0 %v1852
    %v1874 = vpop.f32.mrf.mxu0
    %v1875 = vadd.f32 0.0, %v1874
    %1876 = vdwg.mxu0
    %v1877 = vadd.f32 %v1840, %v1872
    %v1878 = vadd.f32 %v1841, %v1875
    %1881 = vrot.lane.b32.xlu0 %v1838, 32
    %v1882 = vpop.permute.xlu0 %1881
    %1883 = vrot.lane.b32.xlu0 %v1839, 32
    %v1884 = vpop.permute.xlu0 %1883
    %v1885 = vsel %vm60, %v1882, 0
    %v1887 = vsel %vm60, %v1884, 0
    %1889 = vmatpush.msra.mxu0 0.0
    %1890 = vmatpush.msra.mxu0 0.0
    %1891 = vmatpush.msra.mxu0 0.0
    %1892 = vmatpush.msra.mxu0 0.0
    %1893 = vmatpush.msra.mxu0 0.0
    %1894 = vmatpush.msra.mxu0 0.0
    %1895 = vmatpush.msra.mxu0 0.0
    %1896 = vmatpush.msra.mxu0 0.0
    %1897 = vmatpush.msra.mxu0 0.0
    %1898 = vmatpush.msra.mxu0 0.0
    %1899 = vmatpush.msra.mxu0 0.0
    %1900 = vmatpush.msra.mxu0 0.0
    %1901 = vmatpush.msra.mxu0 %v278
    %1902 = vmatpush.msra.mxu0 %v277
    %1903 = vmatpush.msra.mxu0 %v276
    %1904 = vmatpush.msra.mxu0 %v275
    %1905 = vmatmul.f32.gmra.mxu0 %v1885
    %v1906 = vpop.f32.mrf.mxu0
    %v1907 = vadd.f32 0.0, %v1906
    %1908 = vmatmul.f32.gmra.mxu0 %v1887
    %v1909 = vpop.f32.mrf.mxu0
    %v1910 = vadd.f32 0.0, %v1909
    %1911 = vdwg.mxu0
    %v1912 = vadd.f32 %v1842, %v1907
    %v1913 = vadd.f32 %v1843, %v1910
    %v1914 = vxor.u32 %v1877, 2147483648
    %v1915 = vxor.u32 %v1878, 2147483648
    %v1916 = vmul.f32 %v1914, 1.442695
    %v1917 = vpow.pop %v1916
    %v1918 = vmul.f32 %v1915, 1.442695
    %v1919 = vpow.pop %v1918
    %v1920 = vadd.f32 %v1917, 1.0
    %v1921 = vadd.f32 %v1919, 1.0
    %v1922 = vrcp.pop %v1920
    %v1923 = vmul.f32 %v1920, %v1922
    %v1924 = vsub.f32 1.0, %v1923
    %v1925 = vmul.f32 %v1922, %v1924
    %v1926 = vadd.f32 %v1922, %v1925
    %vm1927 = vweird.f32 %v1920
    %vm1928 = vweird.f32 %v1922
    %vm1929 = vmor %vm1927, %vm1928
    %v1930 = vsel %vm1929, %v1922, %v1926
    %v1931 = vand.u32 2147483647, %v1920
    %vm1932 = vcmp.eq.f32.partialorder %v1931, 8.507059e+37
    %v1933 = vand.u32 %v1920, 2147483648
    %v1934 = vor.u32 1.1754944e-38, %v1933
    %v1935 = vsel %vm1932, %v1934, %v1930
    %v1936 = vmul.f32 1.0, %v1935
    %v1937 = vrcp.pop %v1921
    %v1938 = vmul.f32 %v1921, %v1937
    %v1939 = vsub.f32 1.0, %v1938
    %v1940 = vmul.f32 %v1937, %v1939
    %v1941 = vadd.f32 %v1937, %v1940
    %vm1942 = vweird.f32 %v1921
    %vm1943 = vweird.f32 %v1937
    %vm1944 = vmor %vm1942, %vm1943
    %v1945 = vsel %vm1944, %v1937, %v1941
    %v1946 = vand.u32 2147483647, %v1921
    %vm1947 = vcmp.eq.f32.partialorder %v1946, 8.507059e+37
    %v1948 = vand.u32 %v1921, 2147483648
    %v1949 = vor.u32 1.1754944e-38, %v1948
    %v1950 = vsel %vm1947, %v1949, %v1945
    %v1951 = vmul.f32 1.0, %v1950
    %v1952 = vtanh.pop %v1877
    %v1953 = vtanh.pop %v1878
    %v1954 = vmul.f32 %v1936, %v1752
    %v1955 = vmul.f32 %v1951, %v1753
    %1958 = vrot.lane.b32.xlu0 %v1952, 64
    %v1959 = vpop.permute.xlu0 %1958
    %1960 = vrot.lane.b32.xlu0 %v1953, 64
    %v1961 = vpop.permute.xlu0 %1960
    %v1964 = vmul.f32 %v1936, %v1959
    %v1965 = vmul.f32 %v1951, %v1961
    %1968 = vrot.lane.b32.xlu0 %v1964, 32
    %v1969 = vpop.permute.xlu0 %1968
    %1970 = vrot.lane.b32.xlu0 %v1965, 32
    %v1971 = vpop.permute.xlu0 %1970
    %v1974 = vadd.f32 %v1954, %v1969
    %v1975 = vadd.f32 %v1955, %v1971
    %v1976 = vtanh.pop %v1974
    %v1977 = vtanh.pop %v1975
    %1980 = vrot.lane.b32.xlu0 %v1976, 64
    %v1981 = vpop.permute.xlu0 %1980
    %1982 = vrot.lane.b32.xlu0 %v1977, 64
    %v1983 = vpop.permute.xlu0 %1982
    %v1986 = vmul.f32 %v1936, %v1981
    %v1987 = vmul.f32 %v1951, %v1983
    %v1988 = vxor.u32 %v1912, 2147483648
    %v1989 = vxor.u32 %v1913, 2147483648
    %v1990 = vmul.f32 %v1988, 1.442695
    %v1991 = vpow.pop %v1990
    %v1992 = vmul.f32 %v1989, 1.442695
    %v1993 = vpow.pop %v1992
    %v1994 = vadd.f32 %v1991, 1.0
    %v1995 = vadd.f32 %v1993, 1.0
    %v1996 = vrcp.pop %v1994
    %v1997 = vmul.f32 %v1994, %v1996
    %v1998 = vsub.f32 1.0, %v1997
    %v1999 = vmul.f32 %v1996, %v1998
    %v2000 = vadd.f32 %v1996, %v1999
    %vm2001 = vweird.f32 %v1994
    %vm2002 = vweird.f32 %v1996
    %vm2003 = vmor %vm2001, %vm2002
    %v2004 = vsel %vm2003, %v1996, %v2000
    %v2005 = vand.u32 2147483647, %v1994
    %vm2006 = vcmp.eq.f32.partialorder %v2005, 8.507059e+37
    %v2007 = vand.u32 %v1994, 2147483648
    %v2008 = vor.u32 1.1754944e-38, %v2007
    %v2009 = vsel %vm2006, %v2008, %v2004
    %v2010 = vmul.f32 1.0, %v2009
    %v2011 = vrcp.pop %v1995
    %v2012 = vmul.f32 %v1995, %v2011
    %v2013 = vsub.f32 1.0, %v2012
    %v2014 = vmul.f32 %v2011, %v2013
    %v2015 = vadd.f32 %v2011, %v2014
    %vm2016 = vweird.f32 %v1995
    %vm2017 = vweird.f32 %v2011
    %vm2018 = vmor %vm2016, %vm2017
    %v2019 = vsel %vm2018, %v2011, %v2015
    %v2020 = vand.u32 2147483647, %v1995
    %vm2021 = vcmp.eq.f32.partialorder %v2020, 8.507059e+37
    %v2022 = vand.u32 %v1995, 2147483648
    %v2023 = vor.u32 1.1754944e-38, %v2022
    %v2024 = vsel %vm2021, %v2023, %v2019
    %v2025 = vmul.f32 1.0, %v2024
    %v2026 = vtanh.pop %v1912
    %v2027 = vtanh.pop %v1913
    %v2028 = vmul.f32 %v2010, %v1826
    %v2029 = vmul.f32 %v2025, %v1827
    %2032 = vrot.lane.b32.xlu0 %v2026, 64
    %v2033 = vpop.permute.xlu0 %2032
    %2034 = vrot.lane.b32.xlu0 %v2027, 64
    %v2035 = vpop.permute.xlu0 %2034
    %v2038 = vmul.f32 %v2010, %v2033
    %v2039 = vmul.f32 %v2025, %v2035
    %2042 = vrot.lane.b32.xlu0 %v2038, 32
    %v2043 = vpop.permute.xlu0 %2042
    %2044 = vrot.lane.b32.xlu0 %v2039, 32
    %v2045 = vpop.permute.xlu0 %2044
    %v2048 = vadd.f32 %v2028, %v2043
    %v2049 = vadd.f32 %v2029, %v2045
    %v2050 = vtanh.pop %v2048
    %v2051 = vtanh.pop %v2049
    %2054 = vrot.lane.b32.xlu0 %v2050, 64
    %v2055 = vpop.permute.xlu0 %2054
    %2056 = vrot.lane.b32.xlu0 %v2051, 64
    %v2057 = vpop.permute.xlu0 %2056
    %v2060 = vmul.f32 %v2010, %v2055
    %v2061 = vmul.f32 %v2025, %v2057
    %v2062 = vld [vmem:[%s4] sm:$0xff]
    %v2063 = vld [vmem:[%s4 + $0x8] sm:$0xff]
    %v2064 = vld [vmem:[%s4 + $0x10] sm:$0xff]
    %v2065 = vld [vmem:[%s4 + $0x18] sm:$0xff]
    %v2066 = vld [vmem:[%s4 + $0x20] sm:$0xff]
    %v2067 = vld [vmem:[%s4 + $0x28] sm:$0xff]
    %v2068 = vld [vmem:[%s4 + $0x30] sm:$0xff]
    %v2069 = vld [vmem:[%s4 + $0x38] sm:$0xff]
    %2071 = vrot.lane.b32.xlu0 %v2060, 32
    %v2072 = vpop.permute.xlu0 %2071
    %v2073 = vsel %vm60, %v2072, 0
    %2075 = vmatpush.msra.mxu0 0.0
    %2076 = vmatpush.msra.mxu0 0.0
    %2077 = vmatpush.msra.mxu0 0.0
    %2078 = vmatpush.msra.mxu0 0.0
    %2079 = vmatpush.msra.mxu0 0.0
    %2080 = vmatpush.msra.mxu0 0.0
    %2081 = vmatpush.msra.mxu0 0.0
    %2082 = vmatpush.msra.mxu0 0.0
    %2083 = vmatpush.msra.mxu0 0.0
    %2084 = vmatpush.msra.mxu0 0.0
    %2085 = vmatpush.msra.mxu0 0.0
    %2086 = vmatpush.msra.mxu0 0.0
    %2087 = vmatpush.msra.mxu0 %v2069
    %2088 = vmatpush.msra.mxu0 %v2068
    %2089 = vmatpush.msra.mxu0 %v2067
    %2090 = vmatpush.msra.mxu0 %v2066
    %2091 = vmatmul.f32.gmra.mxu0 %v2073
    %v2092 = vpop.f32.mrf.mxu0
    %v2093 = vadd.f32 0.0, %v2092
    %2094 = vdwg.mxu0
    %2096 = vrot.lane.b32.xlu0 %v1986, 32
    %v2097 = vpop.permute.xlu0 %2096
    %v2098 = vsel %vm60, %v2097, 0
    %2100 = vmatpush.msra.mxu0 0.0
    %2101 = vmatpush.msra.mxu0 0.0
    %2102 = vmatpush.msra.mxu0 0.0
    %2103 = vmatpush.msra.mxu0 0.0
    %2104 = vmatpush.msra.mxu0 0.0
    %2105 = vmatpush.msra.mxu0 0.0
    %2106 = vmatpush.msra.mxu0 0.0
    %2107 = vmatpush.msra.mxu0 0.0
    %2108 = vmatpush.msra.mxu0 0.0
    %2109 = vmatpush.msra.mxu0 0.0
    %2110 = vmatpush.msra.mxu0 0.0
    %2111 = vmatpush.msra.mxu0 0.0
    %2112 = vmatpush.msra.mxu0 %v2065
    %2113 = vmatpush.msra.mxu0 %v2064
    %2114 = vmatpush.msra.mxu0 %v2063
    %2115 = vmatpush.msra.mxu0 %v2062
    %2116 = vmatmul.f32.gmra.mxu0 %v2098
    %v2117 = vpop.f32.mrf.mxu0
    %v2118 = vadd.f32 %v2093, %v2117
    %2119 = vdwg.mxu0
    %v2120 = vld [vmem:[%s4 + $0x40] sm:$0xff]
    %v2121 = vld [vmem:[%s4 + $0x48] sm:$0xff]
    %v2122 = vld [vmem:[%s4 + $0x50] sm:$0xff]
    %v2123 = vld [vmem:[%s4 + $0x58] sm:$0xff]
    %2125 = vrot.lane.b32.xlu0 %v1987, 32
    %v2126 = vpop.permute.xlu0 %2125
    %v2127 = vsel %vm60, %v2126, 0
    %2129 = vmatpush.msra.mxu0 0.0
    %2130 = vmatpush.msra.mxu0 0.0
    %2131 = vmatpush.msra.mxu0 0.0
    %2132 = vmatpush.msra.mxu0 0.0
    %2133 = vmatpush.msra.mxu0 0.0
    %2134 = vmatpush.msra.mxu0 0.0
    %2135 = vmatpush.msra.mxu0 0.0
    %2136 = vmatpush.msra.mxu0 0.0
    %2137 = vmatpush.msra.mxu0 0.0
    %2138 = vmatpush.msra.mxu0 0.0
    %2139 = vmatpush.msra.mxu0 0.0
    %2140 = vmatpush.msra.mxu0 0.0
    %2141 = vmatpush.msra.mxu0 %v2123
    %2142 = vmatpush.msra.mxu0 %v2122
    %2143 = vmatpush.msra.mxu0 %v2121
    %2144 = vmatpush.msra.mxu0 %v2120
    %2145 = vmatmul.f32.gmra.mxu0 %v2127
    %v2146 = vpop.f32.mrf.mxu0
    %v2147 = vadd.f32 0.0, %v2146
    %2148 = vdwg.mxu0
    %v2149 = vadd.f32 %v2118, %v2147
    %v2150 = vld [vmem:[%s4 + $0x60] sm:$0xff]
    %v2151 = vld [vmem:[%s4 + $0x68] sm:$0xff]
    %v2152 = vld [vmem:[%s4 + $0x70] sm:$0xff]
    %v2153 = vld [vmem:[%s4 + $0x78] sm:$0xff]
    %2155 = vrot.lane.b32.xlu0 %v2061, 32
    %v2156 = vpop.permute.xlu0 %2155
    %v2157 = vsel %vm60, %v2156, 0
    %2159 = vmatpush.msra.mxu0 0.0
    %2160 = vmatpush.msra.mxu0 0.0
    %2161 = vmatpush.msra.mxu0 0.0
    %2162 = vmatpush.msra.mxu0 0.0
    %2163 = vmatpush.msra.mxu0 0.0
    %2164 = vmatpush.msra.mxu0 0.0
    %2165 = vmatpush.msra.mxu0 0.0
    %2166 = vmatpush.msra.mxu0 0.0
    %2167 = vmatpush.msra.mxu0 0.0
    %2168 = vmatpush.msra.mxu0 0.0
    %2169 = vmatpush.msra.mxu0 0.0
    %2170 = vmatpush.msra.mxu0 0.0
    %2171 = vmatpush.msra.mxu0 %v2153
    %2172 = vmatpush.msra.mxu0 %v2152
    %2173 = vmatpush.msra.mxu0 %v2151
    %2174 = vmatpush.msra.mxu0 %v2150
    %2175 = vmatmul.f32.gmra.mxu0 %v2157
    %v2176 = vpop.f32.mrf.mxu0
    %v2177 = vadd.f32 0.0, %v2176
    %2178 = vdwg.mxu0
    %v2179 = vadd.f32 %v2149, %v2177
    %v2180 = vld [vmem:[%s5] sm:$0x1]
    %v2182 = vperm.slane %v2180, 0
    %v2184 = vadd.f32 %v2179, %v2182
    %v2185 = vtanh.pop %v2184
    %v2186 = vld [vmem:[%s6] sm:$0xff]
    %v2187 = vld [vmem:[%s6 + $0x8] sm:$0xff]
    %v2188 = vld [vmem:[%s6 + $0x10] sm:$0xff]
    %v2189 = vld [vmem:[%s6 + $0x18] sm:$0xff]
    %v2190 = vld [vmem:[%s6 + $0x20] sm:$0xff]
    %v2191 = vld [vmem:[%s6 + $0x28] sm:$0xff]
    %v2192 = vld [vmem:[%s6 + $0x30] sm:$0xff]
    %v2193 = vld [vmem:[%s6 + $0x38] sm:$0xff]
    %v2194 = vld [vmem:[%s7] sm:$0x1]
    %v2196 = vperm.slane %v2194, 0
    %vm2198 = vcmask 523264
    %v2200 = vsel %vm2198, %v2185, 0
    %2202 = vmatpush.msra.mxu0 0.0
    %2203 = vmatpush.msra.mxu0 0.0
    %2204 = vmatpush.msra.mxu0 0.0
    %2205 = vmatpush.msra.mxu0 0.0
    %2206 = vmatpush.msra.mxu0 0.0
    %2207 = vmatpush.msra.mxu0 0.0
    %2208 = vmatpush.msra.mxu0 0.0
    %2209 = vmatpush.msra.mxu0 0.0
    %2210 = vmatpush.msra.mxu0 %v2193
    %2211 = vmatpush.msra.mxu0 %v2192
    %2212 = vmatpush.msra.mxu0 %v2191
    %2213 = vmatpush.msra.mxu0 %v2190
    %2214 = vmatpush.msra.mxu0 %v2189
    %2215 = vmatpush.msra.mxu0 %v2188
    %2216 = vmatpush.msra.mxu0 %v2187
    %2217 = vmatpush.msra.mxu0 %v2186
    %2218 = vmatmul.f32.gmra.mxu0 %v2200
    %v2219 = vpop.f32.mrf.mxu0
    %v2220 = vadd.f32 %v2196, %v2219
    %2221 = vdwg.mxu0
    %2222 = vst [vmem:[#allocation3] sm:$0xff] %v2220
    // Predicated region
    $region34: #{lstm_classifier_forward.1} parent=1 // pred_check
      _
    $region35: #{lstm_classifier_forward.1} parent=1 // pred_check_branch
      %2224 = sbr.rel (0) target = $region37
    $region36: #{lstm_classifier_forward.1} parent=1 // pred_region
      %2226 = vsyncadd [#allocation4], 0
      %s2228 = sshll.u32 [#allocation3], 4
      %s2229 = int_to_ptr.vmem [resolvable:$true] %s2228
      %s2230 = sshll.u32 %s8, 4
      %s2231 = int_to_ptr.hbm [resolvable:$true] %s2230
      %2233 = dma.vmem_to_hbm [thread:$0]  %s2229, 128, %s2231, [#allocation4]
    $region37: #{lstm_classifier_forward.1} parent=1 // pred_fallthru
      _
    // Predicated region
    $region38: #{lstm_classifier_forward.1} parent=1 // pred_check
      _
    $region39: #{lstm_classifier_forward.1} parent=1 // pred_check_branch
      %2235 = sbr.rel (0) target = $region41
    $region40: #{lstm_classifier_forward.1} parent=1 // pred_region
      %2237 = dma.done [#allocation4], 128
    $region41: #{lstm_classifier_forward.1} parent=1 // pred_fallthru
      _
    %2238 = vsyncpa [#allocation4], 1

</llo_original>
